<compile_context>
chip_gen: v5e
topology: v5e:2x2
jax: 0.10.0
libtpu: 0.0.40
codegen_flags: <defaults>
</compile_context>

<pallas_src>
import math

import jax
import jax.numpy as jnp
from jax.experimental import pallas as pl
from jax.experimental.pallas import tpu as pltpu

N_HEAD = 4            # config.n_head
LN_EPS = 1e-5         # PyTorch nn.LayerNorm default
_MASK_VALUE = -1e30   # finite negative: NaN-safe even if a row were ever fully masked
_TRANS_B = (((1,), (1,)), ((), ()))   # dot_general dims for a @ b.T without materializing b.T


def _layernorm(x, w, b):
    mu = jnp.mean(x, axis=-1, keepdims=True)
    var = jnp.mean((x - mu) ** 2, axis=-1, keepdims=True)
    return (x - mu) * jax.lax.rsqrt(var + LN_EPS) * w + b


def _gelu_tanh(x):
    c = math.sqrt(2.0 / math.pi)
    return 0.5 * x * (1.0 + jnp.tanh(c * (x + 0.044715 * x * x * x)))


def block_kernel(x_ref,
                 ln1w_ref, ln1b_ref,
                 wqkv_ref, bqkv_ref, wpr_ref, bpr_ref,
                 ln2w_ref, ln2b_ref,
                 wfc_ref, bfc_ref, wpj_ref, bpj_ref,
                 o_ref, attn_ref):
    blk_b, T, C = x_ref.shape
    nh = N_HEAD
    hd = C // nh
    rows = blk_b * T

    # Residuals and all element-wise math stay in f32; only MXU operands are cast to bf16.
    x = x_ref[...].reshape(rows, C).astype(jnp.float32)           # (rows, C)

    # ---------------- attention branch ----------------
    h1 = _layernorm(x, ln1w_ref[...], ln1b_ref[...])
    # Fused QKV matmul (bf16 MXU, f32 accumulate). 1/sqrt(hd) is pre-folded into the Q
    # columns of wqkv/bqkv by the wrapper, so no (T,T) scaling is needed below.
    qkv = jnp.dot(h1.astype(jnp.bfloat16), wqkv_ref[...],
                  preferred_element_type=jnp.float32) + bqkv_ref[...]   # (rows, 3C) f32

    ri = jax.lax.broadcasted_iota(jnp.int32, (T, T), 0)
    ci = jax.lax.broadcasted_iota(jnp.int32, (T, T), 1)
    causal = ri >= ci                                              # hoisted, built once

    # Per (sequence-in-block, head): softmax(q k^T) v, immediately projected through that
    # head's (hd, C) rows of the output-projection weight and accumulated -> no lane concat.
    for b in range(blk_b):                  # static unroll (tiny)
        r0 = b * T
        acc = jnp.zeros((T, C), jnp.float32)
        for h in range(nh):                 # static unroll over heads
            qh = qkv[r0:r0 + T, h * hd:(h + 1) * hd].astype(jnp.bfloat16)
            kh = qkv[r0:r0 + T, C + h * hd:C + (h + 1) * hd].astype(jnp.bfloat16)
            vh = qkv[r0:r0 + T, 2 * C + h * hd:2 * C + (h + 1) * hd].astype(jnp.bfloat16)

            s = jax.lax.dot_general(qh, kh, _TRANS_B,
                                    preferred_element_type=jnp.float32)   # (T, T) f32
            s = jnp.where(causal, s, _MASK_VALUE)
            s = s - jnp.max(s, axis=-1, keepdims=True)
            p = jnp.exp(s)
            p = p * pl.reciprocal(jnp.sum(p, axis=-1, keepdims=True), approx=True)

            o = jnp.dot(p.astype(jnp.bfloat16), vh,
                        preferred_element_type=jnp.float32)               # (T, hd) f32
            acc = acc + jnp.dot(o.astype(jnp.bfloat16), wpr_ref[h],
                                preferred_element_type=jnp.float32)       # (T, C)  f32
        attn_ref[r0:r0 + T, :] = acc

    x1 = x + attn_ref[...] + bpr_ref[...]                          # residual 1 (f32)

    # ---------------- MLP branch ----------------
    h2 = _layernorm(x1, ln2w_ref[...], ln2b_ref[...])
    f = jnp.dot(h2.astype(jnp.bfloat16), wfc_ref[...],
                preferred_element_type=jnp.float32) + bfc_ref[...]
    f = _gelu_tanh(f)                                              # f32 tanh poly (EUP)
    m = jnp.dot(f.astype(jnp.bfloat16), wpj_ref[...],
                preferred_element_type=jnp.float32) + bpj_ref[...]

    o_ref[...] = (x1 + m).reshape(blk_b, T, C).astype(o_ref.dtype)  # residual 2


def _vmem_limit_bytes():
    # Explicit scoped-VMEM budget, derived per generation with headroom
    # (<=100 MiB on v5e/v6e's 128 MiB, <=56 MiB on v7x's 64 MiB).
    try:
        cap = int(pltpu.get_tpu_info().vmem_capacity_bytes)
    except Exception:
        cap = 64 * 1024 * 1024
    return int(max(32 * 1024 * 1024,
                   min(cap - 8 * 1024 * 1024, 100 * 1024 * 1024)))


def gpt_block(x, params, *, block_b=None, matmul_dtype=jnp.bfloat16):
    """Fused transformer Block forward. `params` holds PyTorch-layout weights."""
    B, T, C = x.shape
    assert C % N_HEAD == 0
    hd = C // N_HEAD

    if block_b is None:
        # Block enough batch elements per grid step to present ~128 rows to the MXU.
        target = max(1, 128 // max(T, 1))
        block_b = 1
        for cand in range(min(B, target), 0, -1):
            if B % cand == 0:
                block_b = cand
                break

    scale = 1.0 / math.sqrt(hd)

    # PyTorch Linear weights are (out, in); transpose to (in, out) so the kernel does x @ W.
    wqkv = params["wqkv"].astype(jnp.float32).T          # (C, 3C)
    wqkv = wqkv.at[:, :C].multiply(scale)                # fold 1/sqrt(hd) into Q columns
    bqkv = params["bqkv"].astype(jnp.float32)
    bqkv = bqkv.at[:C].multiply(scale)

    weights = [
        params["ln1w"].reshape(1, C).astype(jnp.float32),
        params["ln1b"].reshape(1, C).astype(jnp.float32),
        wqkv.astype(matmul_dtype),                                           # (C, 3C)  bf16
        bqkv.reshape(1, 3 * C),                                              # (1, 3C)  f32
        params["wpr"].astype(jnp.float32).T.reshape(N_HEAD, hd, C).astype(matmul_dtype),
        params["bpr"].reshape(1, C).astype(jnp.float32),
        params["ln2w"].reshape(1, C).astype(jnp.float32),
        params["ln2b"].reshape(1, C).astype(jnp.float32),
        params["wfc"].astype(jnp.float32).T.astype(matmul_dtype),            # (C, 4C)  bf16
        params["bfc"].reshape(1, 4 * C).astype(jnp.float32),
        params["wpj"].astype(jnp.float32).T.astype(matmul_dtype),            # (4C, C)  bf16
        params["bpj"].reshape(1, C).astype(jnp.float32),
    ]

    # Weights live in VMEM for the whole kernel (single buffer, no per-step double-buffered
    # DMA); only the activations are pipelined over the grid.
    weight_spec = pl.BlockSpec(memory_space=pltpu.MemorySpace.VMEM)

    grid = (B // block_b,)
    rows = block_b * T

    return pl.pallas_call(
        block_kernel,
        out_shape=jax.ShapeDtypeStruct((B, T, C), x.dtype),
        grid=grid,
        in_specs=[pl.BlockSpec((block_b, T, C), lambda i: (i, 0, 0))]
        + [weight_spec] * len(weights),
        out_specs=pl.BlockSpec((block_b, T, C), lambda i: (i, 0, 0)),
        scratch_shapes=[pltpu.VMEM((rows, C), jnp.float32)],
        compiler_params=pltpu.CompilerParams(
            dimension_semantics=("parallel",),
            vmem_limit_bytes=_vmem_limit_bytes(),
        ),
    )(x, *weights)


# ---------------- pure-JAX reference (mirrors the PyTorch forward, f32) ----------------
def reference_block(x, p):
    B, T, C = x.shape
    nh, hd = N_HEAD, C // N_HEAD

    def ln(z, w, b):
        mu = z.mean(-1, keepdims=True)
        var = ((z - mu) ** 2).mean(-1, keepdims=True)
        return (z - mu) / jnp.sqrt(var + LN_EPS) * w + b

    h = ln(x, p["ln1w"], p["ln1b"])
    qkv = h @ p["wqkv"].T + p["bqkv"]
    q, k, v = jnp.split(qkv, 3, axis=-1)
    q = q.reshape(B, T, nh, hd).transpose(0, 2, 1, 3)
    k = k.reshape(B, T, nh, hd).transpose(0, 2, 1, 3)
    v = v.reshape(B, T, nh, hd).transpose(0, 2, 1, 3)
    att = (q @ k.transpose(0, 1, 3, 2)) * (1.0 / math.sqrt(hd))
    mask = jnp.tril(jnp.ones((T, T)))
    att = jnp.where(mask == 0, -jnp.inf, att)
    att = jax.nn.softmax(att, axis=-1)
    y = (att @ v).transpose(0, 2, 1, 3).reshape(B, T, C)
    y = y @ p["wpr"].T + p["bpr"]
    x = x + y
    h2 = ln(x, p["ln2w"], p["ln2b"])
    f = jax.nn.gelu(h2 @ p["wfc"].T + p["bfc"], approximate=True)
    return x + f @ p["wpj"].T + p["bpj"]


if __name__ == "__main__":
    B, T, C = 2, 8, 32        # batch, block_size(seq), n_embd ; n_head = 4
    key = jax.random.PRNGKey(0)
    ks = jax.random.split(key, 9)

    x = jax.random.normal(ks[0], (B, T, C), jnp.float32)

    params = {
        "ln1w": jnp.ones((C,), jnp.float32),
        "ln1b": jnp.zeros((C,), jnp.float32),
        "wqkv": 0.02 * jax.random.normal(ks[1], (3 * C, C), jnp.float32),
        "bqkv": 0.02 * jax.random.normal(ks[2], (3 * C,), jnp.float32),
        "wpr":  0.02 * jax.random.normal(ks[3], (C, C), jnp.float32),
        "bpr":  0.02 * jax.random.normal(ks[4], (C,), jnp.float32),
        "ln2w": jnp.ones((C,), jnp.float32),
        "ln2b": jnp.zeros((C,), jnp.float32),
        "wfc":  0.02 * jax.random.normal(ks[5], (4 * C, C), jnp.float32),
        "bfc":  0.02 * jax.random.normal(ks[6], (4 * C,), jnp.float32),
        "wpj":  0.02 * jax.random.normal(ks[7], (C, 4 * C), jnp.float32),
        "bpj":  0.02 * jax.random.normal(ks[8], (C,), jnp.float32),
    }

    out = gpt_block(x, params)
    jax.block_until_ready(out)

    ref = reference_block(x, params)
    assert out.shape == (B, T, C)
    max_err = float(jnp.max(jnp.abs(out - ref)))
    # bf16 MXU operands (f32 accumulation) -> allow small deviation from the pure-f32 reference
    assert jnp.allclose(out, ref, atol=2e-2, rtol=2e-2), f"mismatch vs reference: {max_err}"

    print("KERNEL_OK")
</pallas_src>

<mosaic_0001>
module attributes {stable_mosaic.version = 11 : i64} {
  func.func @block_kernel(%arg0: i32, %arg1: memref<2x8x32xf32, #tpu.memory_space<vmem>>, %arg2: memref<1x32xf32, #tpu.memory_space<vmem>>, %arg3: memref<1x32xf32, #tpu.memory_space<vmem>>, %arg4: memref<32x96xbf16, #tpu.memory_space<vmem>>, %arg5: memref<1x96xf32, #tpu.memory_space<vmem>>, %arg6: memref<4x8x32xbf16, #tpu.memory_space<vmem>>, %arg7: memref<1x32xf32, #tpu.memory_space<vmem>>, %arg8: memref<1x32xf32, #tpu.memory_space<vmem>>, %arg9: memref<1x32xf32, #tpu.memory_space<vmem>>, %arg10: memref<32x128xbf16, #tpu.memory_space<vmem>>, %arg11: memref<1x128xf32, #tpu.memory_space<vmem>>, %arg12: memref<128x32xbf16, #tpu.memory_space<vmem>>, %arg13: memref<1x32xf32, #tpu.memory_space<vmem>>, %arg14: memref<2x8x32xf32, #tpu.memory_space<vmem>>, %arg15: memref<16x32xf32, #tpu.memory_space<vmem>>) attributes {dimension_semantics = [#tpu.dimension_semantics<parallel>], iteration_bounds = array<i64: 1>, scalar_prefetch = 0 : i64, scratch_operands = 1 : i64, tpu.core_type = #tpu.core_type<tc>, window_params = [{transform_indices = @transform_0, window_bounds = array<i64: 2, 8, 32>}, {pipeline_mode = #tpu.pipeline_mode<synchronous>, transform_indices = @transform_1, window_bounds = array<i64: 1, 32>}, {pipeline_mode = #tpu.pipeline_mode<synchronous>, transform_indices = @transform_2, window_bounds = array<i64: 1, 32>}, {pipeline_mode = #tpu.pipeline_mode<synchronous>, transform_indices = @transform_3, window_bounds = array<i64: 32, 96>}, {pipeline_mode = #tpu.pipeline_mode<synchronous>, transform_indices = @transform_4, window_bounds = array<i64: 1, 96>}, {pipeline_mode = #tpu.pipeline_mode<synchronous>, transform_indices = @transform_5, window_bounds = array<i64: 4, 8, 32>}, {pipeline_mode = #tpu.pipeline_mode<synchronous>, transform_indices = @transform_6, window_bounds = array<i64: 1, 32>}, {pipeline_mode = #tpu.pipeline_mode<synchronous>, transform_indices = @transform_7, window_bounds = array<i64: 1, 32>}, {pipeline_mode = #tpu.pipeline_mode<synchronous>, transform_indices = @transform_8, window_bounds = array<i64: 1, 32>}, {pipeline_mode = #tpu.pipeline_mode<synchronous>, transform_indices = @transform_9, window_bounds = array<i64: 32, 128>}, {pipeline_mode = #tpu.pipeline_mode<synchronous>, transform_indices = @transform_10, window_bounds = array<i64: 1, 128>}, {pipeline_mode = #tpu.pipeline_mode<synchronous>, transform_indices = @transform_11, window_bounds = array<i64: 128, 32>}, {pipeline_mode = #tpu.pipeline_mode<synchronous>, transform_indices = @transform_12, window_bounds = array<i64: 1, 32>}, {transform_indices = @transform_13, window_bounds = array<i64: 2, 8, 32>}]} {
    %c0 = arith.constant 0 : index
    %c0_0 = arith.constant 0 : index
    %c0_1 = arith.constant 0 : index
    %0 = vector.load %arg1[%c0, %c0_0, %c0_1] : memref<2x8x32xf32, #tpu.memory_space<vmem>>, vector<2x8x32xf32>
    %1 = vector.shape_cast %0 : vector<2x8x32xf32> to vector<16x32xf32>
    %c0_2 = arith.constant 0 : index
    %c0_3 = arith.constant 0 : index
    %2 = vector.load %arg2[%c0_2, %c0_3] : memref<1x32xf32, #tpu.memory_space<vmem>>, vector<1x32xf32>
    %c0_4 = arith.constant 0 : index
    %c0_5 = arith.constant 0 : index
    %3 = vector.load %arg3[%c0_4, %c0_5] : memref<1x32xf32, #tpu.memory_space<vmem>>, vector<1x32xf32>
    %cst = arith.constant dense<0.000000e+00> : vector<16xf32>
    %4 = vector.multi_reduction <add>, %1, %cst [1] : vector<16x32xf32> to vector<16xf32>
    %5 = vector.shape_cast %4 : vector<16xf32> to vector<16x1xf32>
    %cst_6 = arith.constant 3.200000e+01 : f32
    %6 = vector.broadcast %cst_6 : f32 to vector<16x1xf32>
    %7 = arith.divf %5, %6 : vector<16x1xf32>
    %8 = vector.broadcast %7 : vector<16x1xf32> to vector<16x32xf32>
    %9 = arith.subf %1, %8 : vector<16x32xf32>
    %10 = arith.mulf %9, %9 : vector<16x32xf32>
    %cst_7 = arith.constant dense<0.000000e+00> : vector<16xf32>
    %11 = vector.multi_reduction <add>, %10, %cst_7 [1] : vector<16x32xf32> to vector<16xf32>
    %12 = vector.shape_cast %11 : vector<16xf32> to vector<16x1xf32>
    %cst_8 = arith.constant 3.200000e+01 : f32
    %13 = vector.broadcast %cst_8 : f32 to vector<16x1xf32>
    %14 = arith.divf %12, %13 : vector<16x1xf32>
    %15 = vector.broadcast %7 : vector<16x1xf32> to vector<16x32xf32>
    %16 = arith.subf %1, %15 : vector<16x32xf32>
    %cst_9 = arith.constant 9.99999974E-6 : f32
    %17 = vector.broadcast %cst_9 : f32 to vector<16x1xf32>
    %18 = arith.addf %14, %17 : vector<16x1xf32>
    %19 = math.rsqrt %18 : vector<16x1xf32>
    %20 = vector.broadcast %19 : vector<16x1xf32> to vector<16x32xf32>
    %21 = arith.mulf %16, %20 : vector<16x32xf32>
    %22 = vector.broadcast %2 : vector<1x32xf32> to vector<16x32xf32>
    %23 = arith.mulf %21, %22 : vector<16x32xf32>
    %24 = vector.broadcast %3 : vector<1x32xf32> to vector<16x32xf32>
    %25 = arith.addf %23, %24 : vector<16x32xf32>
    %26 = arith.truncf %25 : vector<16x32xf32> to vector<16x32xbf16>
    %c0_10 = arith.constant 0 : index
    %c0_11 = arith.constant 0 : index
    %27 = vector.load %arg4[%c0_10, %c0_11] : memref<32x96xbf16, #tpu.memory_space<vmem>>, vector<32x96xbf16>
    %cst_12 = arith.constant dense<0.000000e+00> : vector<16x96xf32>
    %28 = tpu.matmul %26, %27, %cst_12 {dimension_numbers = #tpu.dot_dimension_numbers<[1], [0], [0], [1], [0, 0, 1, 1], [], []>} : vector<16x32xbf16>, vector<32x96xbf16>, vector<16x96xf32> -> vector<16x96xf32>
    %c0_13 = arith.constant 0 : index
    %c0_14 = arith.constant 0 : index
    %29 = vector.load %arg5[%c0_13, %c0_14] : memref<1x96xf32, #tpu.memory_space<vmem>>, vector<1x96xf32>
    %30 = vector.broadcast %29 : vector<1x96xf32> to vector<16x96xf32>
    %31 = arith.addf %28, %30 : vector<16x96xf32>
    %32 = tpu.iota {dimensions = array<i32: 0>} : vector<8x8xi32>
    %33 = tpu.iota {dimensions = array<i32: 1>} : vector<8x8xi32>
    %34 = arith.cmpi sge, %32, %33 : vector<8x8xi32>
    %cst_15 = arith.constant 0.000000e+00 : f32
    %35 = vector.broadcast %cst_15 : f32 to vector<8x32xf32>
    %36 = vector.extract_strided_slice %31 {offsets = [0, 0], sizes = [8, 8], strides = [1, 1]} : vector<16x96xf32> to vector<8x8xf32>
    %37 = arith.truncf %36 : vector<8x8xf32> to vector<8x8xbf16>
    %38 = vector.extract_strided_slice %31 {offsets = [0, 32], sizes = [8, 8], strides = [1, 1]} : vector<16x96xf32> to vector<8x8xf32>
    %39 = arith.truncf %38 : vector<8x8xf32> to vector<8x8xbf16>
    %40 = vector.extract_strided_slice %31 {offsets = [0, 64], sizes = [8, 8], strides = [1, 1]} : vector<16x96xf32> to vector<8x8xf32>
    %41 = arith.truncf %40 : vector<8x8xf32> to vector<8x8xbf16>
    %cst_16 = arith.constant dense<0.000000e+00> : vector<8x8xf32>
    %42 = tpu.matmul %37, %39, %cst_16 {dimension_numbers = #tpu.dot_dimension_numbers<[1], [1], [0], [0], [0, 0, 1, 0], [], []>} : vector<8x8xbf16>, vector<8x8xbf16>, vector<8x8xf32> -> vector<8x8xf32>
    %cst_17 = arith.constant -1.000000e+30 : f32
    %43 = vector.broadcast %cst_17 : f32 to vector<8x8xf32>
    %44 = arith.select %34, %42, %43 : vector<8x8xi1>, vector<8x8xf32>
    %cst_18 = arith.constant dense<0xFF800000> : vector<8xf32>
    %45 = vector.multi_reduction <maximumf>, %44, %cst_18 [1] : vector<8x8xf32> to vector<8xf32>
    %46 = vector.shape_cast %45 : vector<8xf32> to vector<8x1xf32>
    %47 = vector.broadcast %46 : vector<8x1xf32> to vector<8x8xf32>
    %48 = arith.subf %44, %47 : vector<8x8xf32>
    %49 = math.exp %48 : vector<8x8xf32>
    %cst_19 = arith.constant dense<0.000000e+00> : vector<8xf32>
    %50 = vector.multi_reduction <add>, %49, %cst_19 [1] : vector<8x8xf32> to vector<8xf32>
    %51 = vector.shape_cast %50 : vector<8xf32> to vector<8x1xf32>
    %52 = tpu.reciprocal %51 {approx = true} : vector<8x1xf32> -> vector<8x1xf32>
    %53 = vector.broadcast %52 : vector<8x1xf32> to vector<8x8xf32>
    %54 = arith.mulf %49, %53 : vector<8x8xf32>
    %55 = arith.truncf %54 : vector<8x8xf32> to vector<8x8xbf16>
    %cst_20 = arith.constant dense<0.000000e+00> : vector<8x8xf32>
    %56 = tpu.matmul %55, %41, %cst_20 {dimension_numbers = #tpu.dot_dimension_numbers<[1], [0], [0], [1], [0, 0, 1, 1], [], []>} : vector<8x8xbf16>, vector<8x8xbf16>, vector<8x8xf32> -> vector<8x8xf32>
    %57 = arith.truncf %56 : vector<8x8xf32> to vector<8x8xbf16>
    %c0_21 = arith.constant 0 : index
    %c0_22 = arith.constant 0 : index
    %c0_23 = arith.constant 0 : index
    %58 = vector.load %arg6[%c0_21, %c0_22, %c0_23] : memref<4x8x32xbf16, #tpu.memory_space<vmem>>, vector<1x8x32xbf16>
    %59 = vector.shape_cast %58 : vector<1x8x32xbf16> to vector<8x32xbf16>
    %cst_24 = arith.constant dense<0.000000e+00> : vector<8x32xf32>
    %60 = tpu.matmul %57, %59, %cst_24 {dimension_numbers = #tpu.dot_dimension_numbers<[1], [0], [0], [1], [0, 0, 1, 1], [], []>} : vector<8x8xbf16>, vector<8x32xbf16>, vector<8x32xf32> -> vector<8x32xf32>
    %61 = arith.addf %35, %60 : vector<8x32xf32>
    %62 = vector.extract_strided_slice %31 {offsets = [0, 8], sizes = [8, 8], strides = [1, 1]} : vector<16x96xf32> to vector<8x8xf32>
    %63 = arith.truncf %62 : vector<8x8xf32> to vector<8x8xbf16>
    %64 = vector.extract_strided_slice %31 {offsets = [0, 40], sizes = [8, 8], strides = [1, 1]} : vector<16x96xf32> to vector<8x8xf32>
    %65 = arith.truncf %64 : vector<8x8xf32> to vector<8x8xbf16>
    %66 = vector.extract_strided_slice %31 {offsets = [0, 72], sizes = [8, 8], strides = [1, 1]} : vector<16x96xf32> to vector<8x8xf32>
    %67 = arith.truncf %66 : vector<8x8xf32> to vector<8x8xbf16>
    %cst_25 = arith.constant dense<0.000000e+00> : vector<8x8xf32>
    %68 = tpu.matmul %63, %65, %cst_25 {dimension_numbers = #tpu.dot_dimension_numbers<[1], [1], [0], [0], [0, 0, 1, 0], [], []>} : vector<8x8xbf16>, vector<8x8xbf16>, vector<8x8xf32> -> vector<8x8xf32>
    %cst_26 = arith.constant -1.000000e+30 : f32
    %69 = vector.broadcast %cst_26 : f32 to vector<8x8xf32>
    %70 = arith.select %34, %68, %69 : vector<8x8xi1>, vector<8x8xf32>
    %cst_27 = arith.constant dense<0xFF800000> : vector<8xf32>
    %71 = vector.multi_reduction <maximumf>, %70, %cst_27 [1] : vector<8x8xf32> to vector<8xf32>
    %72 = vector.shape_cast %71 : vector<8xf32> to vector<8x1xf32>
    %73 = vector.broadcast %72 : vector<8x1xf32> to vector<8x8xf32>
    %74 = arith.subf %70, %73 : vector<8x8xf32>
    %75 = math.exp %74 : vector<8x8xf32>
    %cst_28 = arith.constant dense<0.000000e+00> : vector<8xf32>
    %76 = vector.multi_reduction <add>, %75, %cst_28 [1] : vector<8x8xf32> to vector<8xf32>
    %77 = vector.shape_cast %76 : vector<8xf32> to vector<8x1xf32>
    %78 = tpu.reciprocal %77 {approx = true} : vector<8x1xf32> -> vector<8x1xf32>
    %79 = vector.broadcast %78 : vector<8x1xf32> to vector<8x8xf32>
    %80 = arith.mulf %75, %79 : vector<8x8xf32>
    %81 = arith.truncf %80 : vector<8x8xf32> to vector<8x8xbf16>
    %cst_29 = arith.constant dense<0.000000e+00> : vector<8x8xf32>
    %82 = tpu.matmul %81, %67, %cst_29 {dimension_numbers = #tpu.dot_dimension_numbers<[1], [0], [0], [1], [0, 0, 1, 1], [], []>} : vector<8x8xbf16>, vector<8x8xbf16>, vector<8x8xf32> -> vector<8x8xf32>
    %83 = arith.truncf %82 : vector<8x8xf32> to vector<8x8xbf16>
    %c1 = arith.constant 1 : index
    %c0_30 = arith.constant 0 : index
    %c0_31 = arith.constant 0 : index
    %84 = vector.load %arg6[%c1, %c0_30, %c0_31] : memref<4x8x32xbf16, #tpu.memory_space<vmem>>, vector<1x8x32xbf16>
    %85 = vector.shape_cast %84 : vector<1x8x32xbf16> to vector<8x32xbf16>
    %cst_32 = arith.constant dense<0.000000e+00> : vector<8x32xf32>
    %86 = tpu.matmul %83, %85, %cst_32 {dimension_numbers = #tpu.dot_dimension_numbers<[1], [0], [0], [1], [0, 0, 1, 1], [], []>} : vector<8x8xbf16>, vector<8x32xbf16>, vector<8x32xf32> -> vector<8x32xf32>
    %87 = arith.addf %61, %86 : vector<8x32xf32>
    %88 = vector.extract_strided_slice %31 {offsets = [0, 16], sizes = [8, 8], strides = [1, 1]} : vector<16x96xf32> to vector<8x8xf32>
    %89 = arith.truncf %88 : vector<8x8xf32> to vector<8x8xbf16>
    %90 = vector.extract_strided_slice %31 {offsets = [0, 48], sizes = [8, 8], strides = [1, 1]} : vector<16x96xf32> to vector<8x8xf32>
    %91 = arith.truncf %90 : vector<8x8xf32> to vector<8x8xbf16>
    %92 = vector.extract_strided_slice %31 {offsets = [0, 80], sizes = [8, 8], strides = [1, 1]} : vector<16x96xf32> to vector<8x8xf32>
    %93 = arith.truncf %92 : vector<8x8xf32> to vector<8x8xbf16>
    %cst_33 = arith.constant dense<0.000000e+00> : vector<8x8xf32>
    %94 = tpu.matmul %89, %91, %cst_33 {dimension_numbers = #tpu.dot_dimension_numbers<[1], [1], [0], [0], [0, 0, 1, 0], [], []>} : vector<8x8xbf16>, vector<8x8xbf16>, vector<8x8xf32> -> vector<8x8xf32>
    %cst_34 = arith.constant -1.000000e+30 : f32
    %95 = vector.broadcast %cst_34 : f32 to vector<8x8xf32>
    %96 = arith.select %34, %94, %95 : vector<8x8xi1>, vector<8x8xf32>
    %cst_35 = arith.constant dense<0xFF800000> : vector<8xf32>
    %97 = vector.multi_reduction <maximumf>, %96, %cst_35 [1] : vector<8x8xf32> to vector<8xf32>
    %98 = vector.shape_cast %97 : vector<8xf32> to vector<8x1xf32>
    %99 = vector.broadcast %98 : vector<8x1xf32> to vector<8x8xf32>
    %100 = arith.subf %96, %99 : vector<8x8xf32>
    %101 = math.exp %100 : vector<8x8xf32>
    %cst_36 = arith.constant dense<0.000000e+00> : vector<8xf32>
    %102 = vector.multi_reduction <add>, %101, %cst_36 [1] : vector<8x8xf32> to vector<8xf32>
    %103 = vector.shape_cast %102 : vector<8xf32> to vector<8x1xf32>
    %104 = tpu.reciprocal %103 {approx = true} : vector<8x1xf32> -> vector<8x1xf32>
    %105 = vector.broadcast %104 : vector<8x1xf32> to vector<8x8xf32>
    %106 = arith.mulf %101, %105 : vector<8x8xf32>
    %107 = arith.truncf %106 : vector<8x8xf32> to vector<8x8xbf16>
    %cst_37 = arith.constant dense<0.000000e+00> : vector<8x8xf32>
    %108 = tpu.matmul %107, %93, %cst_37 {dimension_numbers = #tpu.dot_dimension_numbers<[1], [0], [0], [1], [0, 0, 1, 1], [], []>} : vector<8x8xbf16>, vector<8x8xbf16>, vector<8x8xf32> -> vector<8x8xf32>
    %109 = arith.truncf %108 : vector<8x8xf32> to vector<8x8xbf16>
    %c2 = arith.constant 2 : index
    %c0_38 = arith.constant 0 : index
    %c0_39 = arith.constant 0 : index
    %110 = vector.load %arg6[%c2, %c0_38, %c0_39] : memref<4x8x32xbf16, #tpu.memory_space<vmem>>, vector<1x8x32xbf16>
    %111 = vector.shape_cast %110 : vector<1x8x32xbf16> to vector<8x32xbf16>
    %cst_40 = arith.constant dense<0.000000e+00> : vector<8x32xf32>
    %112 = tpu.matmul %109, %111, %cst_40 {dimension_numbers = #tpu.dot_dimension_numbers<[1], [0], [0], [1], [0, 0, 1, 1], [], []>} : vector<8x8xbf16>, vector<8x32xbf16>, vector<8x32xf32> -> vector<8x32xf32>
    %113 = arith.addf %87, %112 : vector<8x32xf32>
    %114 = vector.extract_strided_slice %31 {offsets = [0, 24], sizes = [8, 8], strides = [1, 1]} : vector<16x96xf32> to vector<8x8xf32>
    %115 = arith.truncf %114 : vector<8x8xf32> to vector<8x8xbf16>
    %116 = vector.extract_strided_slice %31 {offsets = [0, 56], sizes = [8, 8], strides = [1, 1]} : vector<16x96xf32> to vector<8x8xf32>
    %117 = arith.truncf %116 : vector<8x8xf32> to vector<8x8xbf16>
    %118 = vector.extract_strided_slice %31 {offsets = [0, 88], sizes = [8, 8], strides = [1, 1]} : vector<16x96xf32> to vector<8x8xf32>
    %119 = arith.truncf %118 : vector<8x8xf32> to vector<8x8xbf16>
    %cst_41 = arith.constant dense<0.000000e+00> : vector<8x8xf32>
    %120 = tpu.matmul %115, %117, %cst_41 {dimension_numbers = #tpu.dot_dimension_numbers<[1], [1], [0], [0], [0, 0, 1, 0], [], []>} : vector<8x8xbf16>, vector<8x8xbf16>, vector<8x8xf32> -> vector<8x8xf32>
    %cst_42 = arith.constant -1.000000e+30 : f32
    %121 = vector.broadcast %cst_42 : f32 to vector<8x8xf32>
    %122 = arith.select %34, %120, %121 : vector<8x8xi1>, vector<8x8xf32>
    %cst_43 = arith.constant dense<0xFF800000> : vector<8xf32>
    %123 = vector.multi_reduction <maximumf>, %122, %cst_43 [1] : vector<8x8xf32> to vector<8xf32>
    %124 = vector.shape_cast %123 : vector<8xf32> to vector<8x1xf32>
    %125 = vector.broadcast %124 : vector<8x1xf32> to vector<8x8xf32>
    %126 = arith.subf %122, %125 : vector<8x8xf32>
    %127 = math.exp %126 : vector<8x8xf32>
    %cst_44 = arith.constant dense<0.000000e+00> : vector<8xf32>
    %128 = vector.multi_reduction <add>, %127, %cst_44 [1] : vector<8x8xf32> to vector<8xf32>
    %129 = vector.shape_cast %128 : vector<8xf32> to vector<8x1xf32>
    %130 = tpu.reciprocal %129 {approx = true} : vector<8x1xf32> -> vector<8x1xf32>
    %131 = vector.broadcast %130 : vector<8x1xf32> to vector<8x8xf32>
    %132 = arith.mulf %127, %131 : vector<8x8xf32>
    %133 = arith.truncf %132 : vector<8x8xf32> to vector<8x8xbf16>
    %cst_45 = arith.constant dense<0.000000e+00> : vector<8x8xf32>
    %134 = tpu.matmul %133, %119, %cst_45 {dimension_numbers = #tpu.dot_dimension_numbers<[1], [0], [0], [1], [0, 0, 1, 1], [], []>} : vector<8x8xbf16>, vector<8x8xbf16>, vector<8x8xf32> -> vector<8x8xf32>
    %135 = arith.truncf %134 : vector<8x8xf32> to vector<8x8xbf16>
    %c3 = arith.constant 3 : index
    %c0_46 = arith.constant 0 : index
    %c0_47 = arith.constant 0 : index
    %136 = vector.load %arg6[%c3, %c0_46, %c0_47] : memref<4x8x32xbf16, #tpu.memory_space<vmem>>, vector<1x8x32xbf16>
    %137 = vector.shape_cast %136 : vector<1x8x32xbf16> to vector<8x32xbf16>
    %cst_48 = arith.constant dense<0.000000e+00> : vector<8x32xf32>
    %138 = tpu.matmul %135, %137, %cst_48 {dimension_numbers = #tpu.dot_dimension_numbers<[1], [0], [0], [1], [0, 0, 1, 1], [], []>} : vector<8x8xbf16>, vector<8x32xbf16>, vector<8x32xf32> -> vector<8x32xf32>
    %139 = arith.addf %113, %138 : vector<8x32xf32>
    %c0_49 = arith.constant 0 : index
    %c0_50 = arith.constant 0 : index
    %140 = vector.load %arg15[%c0_49, %c0_50] : memref<16x32xf32, #tpu.memory_space<vmem>>, vector<8x32xf32>
    tpu.vector_store %arg15[%c0_49, %c0_50], %139 {strides = array<i32>} : memref<16x32xf32, #tpu.memory_space<vmem>>, vector<8x32xf32>,
    %cst_51 = arith.constant 0.000000e+00 : f32
    %141 = vector.broadcast %cst_51 : f32 to vector<8x32xf32>
    %142 = vector.extract_strided_slice %31 {offsets = [8, 0], sizes = [8, 8], strides = [1, 1]} : vector<16x96xf32> to vector<8x8xf32>
    %143 = arith.truncf %142 : vector<8x8xf32> to vector<8x8xbf16>
    %144 = vector.extract_strided_slice %31 {offsets = [8, 32], sizes = [8, 8], strides = [1, 1]} : vector<16x96xf32> to vector<8x8xf32>
    %145 = arith.truncf %144 : vector<8x8xf32> to vector<8x8xbf16>
    %146 = vector.extract_strided_slice %31 {offsets = [8, 64], sizes = [8, 8], strides = [1, 1]} : vector<16x96xf32> to vector<8x8xf32>
    %147 = arith.truncf %146 : vector<8x8xf32> to vector<8x8xbf16>
    %cst_52 = arith.constant dense<0.000000e+00> : vector<8x8xf32>
    %148 = tpu.matmul %143, %145, %cst_52 {dimension_numbers = #tpu.dot_dimension_numbers<[1], [1], [0], [0], [0, 0, 1, 0], [], []>} : vector<8x8xbf16>, vector<8x8xbf16>, vector<8x8xf32> -> vector<8x8xf32>
    %cst_53 = arith.constant -1.000000e+30 : f32
    %149 = vector.broadcast %cst_53 : f32 to vector<8x8xf32>
    %150 = arith.select %34, %148, %149 : vector<8x8xi1>, vector<8x8xf32>
    %cst_54 = arith.constant dense<0xFF800000> : vector<8xf32>
    %151 = vector.multi_reduction <maximumf>, %150, %cst_54 [1] : vector<8x8xf32> to vector<8xf32>
    %152 = vector.shape_cast %151 : vector<8xf32> to vector<8x1xf32>
    %153 = vector.broadcast %152 : vector<8x1xf32> to vector<8x8xf32>
    %154 = arith.subf %150, %153 : vector<8x8xf32>
    %155 = math.exp %154 : vector<8x8xf32>
    %cst_55 = arith.constant dense<0.000000e+00> : vector<8xf32>
    %156 = vector.multi_reduction <add>, %155, %cst_55 [1] : vector<8x8xf32> to vector<8xf32>
    %157 = vector.shape_cast %156 : vector<8xf32> to vector<8x1xf32>
    %158 = tpu.reciprocal %157 {approx = true} : vector<8x1xf32> -> vector<8x1xf32>
    %159 = vector.broadcast %158 : vector<8x1xf32> to vector<8x8xf32>
    %160 = arith.mulf %155, %159 : vector<8x8xf32>
    %161 = arith.truncf %160 : vector<8x8xf32> to vector<8x8xbf16>
    %cst_56 = arith.constant dense<0.000000e+00> : vector<8x8xf32>
    %162 = tpu.matmul %161, %147, %cst_56 {dimension_numbers = #tpu.dot_dimension_numbers<[1], [0], [0], [1], [0, 0, 1, 1], [], []>} : vector<8x8xbf16>, vector<8x8xbf16>, vector<8x8xf32> -> vector<8x8xf32>
    %163 = arith.truncf %162 : vector<8x8xf32> to vector<8x8xbf16>
    %c0_57 = arith.constant 0 : index
    %c0_58 = arith.constant 0 : index
    %c0_59 = arith.constant 0 : index
    %164 = vector.load %arg6[%c0_57, %c0_58, %c0_59] : memref<4x8x32xbf16, #tpu.memory_space<vmem>>, vector<1x8x32xbf16>
    %165 = vector.shape_cast %164 : vector<1x8x32xbf16> to vector<8x32xbf16>
    %cst_60 = arith.constant dense<0.000000e+00> : vector<8x32xf32>
    %166 = tpu.matmul %163, %165, %cst_60 {dimension_numbers = #tpu.dot_dimension_numbers<[1], [0], [0], [1], [0, 0, 1, 1], [], []>} : vector<8x8xbf16>, vector<8x32xbf16>, vector<8x32xf32> -> vector<8x32xf32>
    %167 = arith.addf %141, %166 : vector<8x32xf32>
    %168 = vector.extract_strided_slice %31 {offsets = [8, 8], sizes = [8, 8], strides = [1, 1]} : vector<16x96xf32> to vector<8x8xf32>
    %169 = arith.truncf %168 : vector<8x8xf32> to vector<8x8xbf16>
    %170 = vector.extract_strided_slice %31 {offsets = [8, 40], sizes = [8, 8], strides = [1, 1]} : vector<16x96xf32> to vector<8x8xf32>
    %171 = arith.truncf %170 : vector<8x8xf32> to vector<8x8xbf16>
    %172 = vector.extract_strided_slice %31 {offsets = [8, 72], sizes = [8, 8], strides = [1, 1]} : vector<16x96xf32> to vector<8x8xf32>
    %173 = arith.truncf %172 : vector<8x8xf32> to vector<8x8xbf16>
    %cst_61 = arith.constant dense<0.000000e+00> : vector<8x8xf32>
    %174 = tpu.matmul %169, %171, %cst_61 {dimension_numbers = #tpu.dot_dimension_numbers<[1], [1], [0], [0], [0, 0, 1, 0], [], []>} : vector<8x8xbf16>, vector<8x8xbf16>, vector<8x8xf32> -> vector<8x8xf32>
    %cst_62 = arith.constant -1.000000e+30 : f32
    %175 = vector.broadcast %cst_62 : f32 to vector<8x8xf32>
    %176 = arith.select %34, %174, %175 : vector<8x8xi1>, vector<8x8xf32>
    %cst_63 = arith.constant dense<0xFF800000> : vector<8xf32>
    %177 = vector.multi_reduction <maximumf>, %176, %cst_63 [1] : vector<8x8xf32> to vector<8xf32>
    %178 = vector.shape_cast %177 : vector<8xf32> to vector<8x1xf32>
    %179 = vector.broadcast %178 : vector<8x1xf32> to vector<8x8xf32>
    %180 = arith.subf %176, %179 : vector<8x8xf32>
    %181 = math.exp %180 : vector<8x8xf32>
    %cst_64 = arith.constant dense<0.000000e+00> : vector<8xf32>
    %182 = vector.multi_reduction <add>, %181, %cst_64 [1] : vector<8x8xf32> to vector<8xf32>
    %183 = vector.shape_cast %182 : vector<8xf32> to vector<8x1xf32>
    %184 = tpu.reciprocal %183 {approx = true} : vector<8x1xf32> -> vector<8x1xf32>
    %185 = vector.broadcast %184 : vector<8x1xf32> to vector<8x8xf32>
    %186 = arith.mulf %181, %185 : vector<8x8xf32>
    %187 = arith.truncf %186 : vector<8x8xf32> to vector<8x8xbf16>
    %cst_65 = arith.constant dense<0.000000e+00> : vector<8x8xf32>
    %188 = tpu.matmul %187, %173, %cst_65 {dimension_numbers = #tpu.dot_dimension_numbers<[1], [0], [0], [1], [0, 0, 1, 1], [], []>} : vector<8x8xbf16>, vector<8x8xbf16>, vector<8x8xf32> -> vector<8x8xf32>
    %189 = arith.truncf %188 : vector<8x8xf32> to vector<8x8xbf16>
    %c1_66 = arith.constant 1 : index
    %c0_67 = arith.constant 0 : index
    %c0_68 = arith.constant 0 : index
    %190 = vector.load %arg6[%c1_66, %c0_67, %c0_68] : memref<4x8x32xbf16, #tpu.memory_space<vmem>>, vector<1x8x32xbf16>
    %191 = vector.shape_cast %190 : vector<1x8x32xbf16> to vector<8x32xbf16>
    %cst_69 = arith.constant dense<0.000000e+00> : vector<8x32xf32>
    %192 = tpu.matmul %189, %191, %cst_69 {dimension_numbers = #tpu.dot_dimension_numbers<[1], [0], [0], [1], [0, 0, 1, 1], [], []>} : vector<8x8xbf16>, vector<8x32xbf16>, vector<8x32xf32> -> vector<8x32xf32>
    %193 = arith.addf %167, %192 : vector<8x32xf32>
    %194 = vector.extract_strided_slice %31 {offsets = [8, 16], sizes = [8, 8], strides = [1, 1]} : vector<16x96xf32> to vector<8x8xf32>
    %195 = arith.truncf %194 : vector<8x8xf32> to vector<8x8xbf16>
    %196 = vector.extract_strided_slice %31 {offsets = [8, 48], sizes = [8, 8], strides = [1, 1]} : vector<16x96xf32> to vector<8x8xf32>
    %197 = arith.truncf %196 : vector<8x8xf32> to vector<8x8xbf16>
    %198 = vector.extract_strided_slice %31 {offsets = [8, 80], sizes = [8, 8], strides = [1, 1]} : vector<16x96xf32> to vector<8x8xf32>
    %199 = arith.truncf %198 : vector<8x8xf32> to vector<8x8xbf16>
    %cst_70 = arith.constant dense<0.000000e+00> : vector<8x8xf32>
    %200 = tpu.matmul %195, %197, %cst_70 {dimension_numbers = #tpu.dot_dimension_numbers<[1], [1], [0], [0], [0, 0, 1, 0], [], []>} : vector<8x8xbf16>, vector<8x8xbf16>, vector<8x8xf32> -> vector<8x8xf32>
    %cst_71 = arith.constant -1.000000e+30 : f32
    %201 = vector.broadcast %cst_71 : f32 to vector<8x8xf32>
    %202 = arith.select %34, %200, %201 : vector<8x8xi1>, vector<8x8xf32>
    %cst_72 = arith.constant dense<0xFF800000> : vector<8xf32>
    %203 = vector.multi_reduction <maximumf>, %202, %cst_72 [1] : vector<8x8xf32> to vector<8xf32>
    %204 = vector.shape_cast %203 : vector<8xf32> to vector<8x1xf32>
    %205 = vector.broadcast %204 : vector<8x1xf32> to vector<8x8xf32>
    %206 = arith.subf %202, %205 : vector<8x8xf32>
    %207 = math.exp %206 : vector<8x8xf32>
    %cst_73 = arith.constant dense<0.000000e+00> : vector<8xf32>
    %208 = vector.multi_reduction <add>, %207, %cst_73 [1] : vector<8x8xf32> to vector<8xf32>
    %209 = vector.shape_cast %208 : vector<8xf32> to vector<8x1xf32>
    %210 = tpu.reciprocal %209 {approx = true} : vector<8x1xf32> -> vector<8x1xf32>
    %211 = vector.broadcast %210 : vector<8x1xf32> to vector<8x8xf32>
    %212 = arith.mulf %207, %211 : vector<8x8xf32>
    %213 = arith.truncf %212 : vector<8x8xf32> to vector<8x8xbf16>
    %cst_74 = arith.constant dense<0.000000e+00> : vector<8x8xf32>
    %214 = tpu.matmul %213, %199, %cst_74 {dimension_numbers = #tpu.dot_dimension_numbers<[1], [0], [0], [1], [0, 0, 1, 1], [], []>} : vector<8x8xbf16>, vector<8x8xbf16>, vector<8x8xf32> -> vector<8x8xf32>
    %215 = arith.truncf %214 : vector<8x8xf32> to vector<8x8xbf16>
    %c2_75 = arith.constant 2 : index
    %c0_76 = arith.constant 0 : index
    %c0_77 = arith.constant 0 : index
    %216 = vector.load %arg6[%c2_75, %c0_76, %c0_77] : memref<4x8x32xbf16, #tpu.memory_space<vmem>>, vector<1x8x32xbf16>
    %217 = vector.shape_cast %216 : vector<1x8x32xbf16> to vector<8x32xbf16>
    %cst_78 = arith.constant dense<0.000000e+00> : vector<8x32xf32>
    %218 = tpu.matmul %215, %217, %cst_78 {dimension_numbers = #tpu.dot_dimension_numbers<[1], [0], [0], [1], [0, 0, 1, 1], [], []>} : vector<8x8xbf16>, vector<8x32xbf16>, vector<8x32xf32> -> vector<8x32xf32>
    %219 = arith.addf %193, %218 : vector<8x32xf32>
    %220 = vector.extract_strided_slice %31 {offsets = [8, 24], sizes = [8, 8], strides = [1, 1]} : vector<16x96xf32> to vector<8x8xf32>
    %221 = arith.truncf %220 : vector<8x8xf32> to vector<8x8xbf16>
    %222 = vector.extract_strided_slice %31 {offsets = [8, 56], sizes = [8, 8], strides = [1, 1]} : vector<16x96xf32> to vector<8x8xf32>
    %223 = arith.truncf %222 : vector<8x8xf32> to vector<8x8xbf16>
    %224 = vector.extract_strided_slice %31 {offsets = [8, 88], sizes = [8, 8], strides = [1, 1]} : vector<16x96xf32> to vector<8x8xf32>
    %225 = arith.truncf %224 : vector<8x8xf32> to vector<8x8xbf16>
    %cst_79 = arith.constant dense<0.000000e+00> : vector<8x8xf32>
    %226 = tpu.matmul %221, %223, %cst_79 {dimension_numbers = #tpu.dot_dimension_numbers<[1], [1], [0], [0], [0, 0, 1, 0], [], []>} : vector<8x8xbf16>, vector<8x8xbf16>, vector<8x8xf32> -> vector<8x8xf32>
    %cst_80 = arith.constant -1.000000e+30 : f32
    %227 = vector.broadcast %cst_80 : f32 to vector<8x8xf32>
    %228 = arith.select %34, %226, %227 : vector<8x8xi1>, vector<8x8xf32>
    %cst_81 = arith.constant dense<0xFF800000> : vector<8xf32>
    %229 = vector.multi_reduction <maximumf>, %228, %cst_81 [1] : vector<8x8xf32> to vector<8xf32>
    %230 = vector.shape_cast %229 : vector<8xf32> to vector<8x1xf32>
    %231 = vector.broadcast %230 : vector<8x1xf32> to vector<8x8xf32>
    %232 = arith.subf %228, %231 : vector<8x8xf32>
    %233 = math.exp %232 : vector<8x8xf32>
    %cst_82 = arith.constant dense<0.000000e+00> : vector<8xf32>
    %234 = vector.multi_reduction <add>, %233, %cst_82 [1] : vector<8x8xf32> to vector<8xf32>
    %235 = vector.shape_cast %234 : vector<8xf32> to vector<8x1xf32>
    %236 = tpu.reciprocal %235 {approx = true} : vector<8x1xf32> -> vector<8x1xf32>
    %237 = vector.broadcast %236 : vector<8x1xf32> to vector<8x8xf32>
    %238 = arith.mulf %233, %237 : vector<8x8xf32>
    %239 = arith.truncf %238 : vector<8x8xf32> to vector<8x8xbf16>
    %cst_83 = arith.constant dense<0.000000e+00> : vector<8x8xf32>
    %240 = tpu.matmul %239, %225, %cst_83 {dimension_numbers = #tpu.dot_dimension_numbers<[1], [0], [0], [1], [0, 0, 1, 1], [], []>} : vector<8x8xbf16>, vector<8x8xbf16>, vector<8x8xf32> -> vector<8x8xf32>
    %241 = arith.truncf %240 : vector<8x8xf32> to vector<8x8xbf16>
    %c3_84 = arith.constant 3 : index
    %c0_85 = arith.constant 0 : index
    %c0_86 = arith.constant 0 : index
    %242 = vector.load %arg6[%c3_84, %c0_85, %c0_86] : memref<4x8x32xbf16, #tpu.memory_space<vmem>>, vector<1x8x32xbf16>
    %243 = vector.shape_cast %242 : vector<1x8x32xbf16> to vector<8x32xbf16>
    %cst_87 = arith.constant dense<0.000000e+00> : vector<8x32xf32>
    %244 = tpu.matmul %241, %243, %cst_87 {dimension_numbers = #tpu.dot_dimension_numbers<[1], [0], [0], [1], [0, 0, 1, 1], [], []>} : vector<8x8xbf16>, vector<8x32xbf16>, vector<8x32xf32> -> vector<8x32xf32>
    %245 = arith.addf %219, %244 : vector<8x32xf32>
    %c8 = arith.constant 8 : index
    %c0_88 = arith.constant 0 : index
    %246 = vector.load %arg15[%c8, %c0_88] : memref<16x32xf32, #tpu.memory_space<vmem>>, vector<8x32xf32>
    tpu.vector_store %arg15[%c8, %c0_88], %245 {strides = array<i32>} : memref<16x32xf32, #tpu.memory_space<vmem>>, vector<8x32xf32>,
    %c0_89 = arith.constant 0 : index
    %c0_90 = arith.constant 0 : index
    %247 = vector.load %arg15[%c0_89, %c0_90] : memref<16x32xf32, #tpu.memory_space<vmem>>, vector<16x32xf32>
    %248 = arith.addf %1, %247 : vector<16x32xf32>
    %c0_91 = arith.constant 0 : index
    %c0_92 = arith.constant 0 : index
    %249 = vector.load %arg7[%c0_91, %c0_92] : memref<1x32xf32, #tpu.memory_space<vmem>>, vector<1x32xf32>
    %250 = vector.broadcast %249 : vector<1x32xf32> to vector<16x32xf32>
    %251 = arith.addf %248, %250 : vector<16x32xf32>
    %c0_93 = arith.constant 0 : index
    %c0_94 = arith.constant 0 : index
    %252 = vector.load %arg8[%c0_93, %c0_94] : memref<1x32xf32, #tpu.memory_space<vmem>>, vector<1x32xf32>
    %c0_95 = arith.constant 0 : index
    %c0_96 = arith.constant 0 : index
    %253 = vector.load %arg9[%c0_95, %c0_96] : memref<1x32xf32, #tpu.memory_space<vmem>>, vector<1x32xf32>
    %cst_97 = arith.constant dense<0.000000e+00> : vector<16xf32>
    %254 = vector.multi_reduction <add>, %251, %cst_97 [1] : vector<16x32xf32> to vector<16xf32>
    %255 = vector.shape_cast %254 : vector<16xf32> to vector<16x1xf32>
    %cst_98 = arith.constant 3.200000e+01 : f32
    %256 = vector.broadcast %cst_98 : f32 to vector<16x1xf32>
    %257 = arith.divf %255, %256 : vector<16x1xf32>
    %258 = vector.broadcast %257 : vector<16x1xf32> to vector<16x32xf32>
    %259 = arith.subf %251, %258 : vector<16x32xf32>
    %260 = arith.mulf %259, %259 : vector<16x32xf32>
    %cst_99 = arith.constant dense<0.000000e+00> : vector<16xf32>
    %261 = vector.multi_reduction <add>, %260, %cst_99 [1] : vector<16x32xf32> to vector<16xf32>
    %262 = vector.shape_cast %261 : vector<16xf32> to vector<16x1xf32>
    %cst_100 = arith.constant 3.200000e+01 : f32
    %263 = vector.broadcast %cst_100 : f32 to vector<16x1xf32>
    %264 = arith.divf %262, %263 : vector<16x1xf32>
    %265 = vector.broadcast %257 : vector<16x1xf32> to vector<16x32xf32>
    %266 = arith.subf %251, %265 : vector<16x32xf32>
    %cst_101 = arith.constant 9.99999974E-6 : f32
    %267 = vector.broadcast %cst_101 : f32 to vector<16x1xf32>
    %268 = arith.addf %264, %267 : vector<16x1xf32>
    %269 = math.rsqrt %268 : vector<16x1xf32>
    %270 = vector.broadcast %269 : vector<16x1xf32> to vector<16x32xf32>
    %271 = arith.mulf %266, %270 : vector<16x32xf32>
    %272 = vector.broadcast %252 : vector<1x32xf32> to vector<16x32xf32>
    %273 = arith.mulf %271, %272 : vector<16x32xf32>
    %274 = vector.broadcast %253 : vector<1x32xf32> to vector<16x32xf32>
    %275 = arith.addf %273, %274 : vector<16x32xf32>
    %276 = arith.truncf %275 : vector<16x32xf32> to vector<16x32xbf16>
    %c0_102 = arith.constant 0 : index
    %c0_103 = arith.constant 0 : index
    %277 = vector.load %arg10[%c0_102, %c0_103] : memref<32x128xbf16, #tpu.memory_space<vmem>>, vector<32x128xbf16>
    %cst_104 = arith.constant dense<0.000000e+00> : vector<16x128xf32>
    %278 = tpu.matmul %276, %277, %cst_104 {dimension_numbers = #tpu.dot_dimension_numbers<[1], [0], [0], [1], [0, 0, 1, 1], [], []>} : vector<16x32xbf16>, vector<32x128xbf16>, vector<16x128xf32> -> vector<16x128xf32>
    %c0_105 = arith.constant 0 : index
    %c0_106 = arith.constant 0 : index
    %279 = vector.load %arg11[%c0_105, %c0_106] : memref<1x128xf32, #tpu.memory_space<vmem>>, vector<1x128xf32>
    %280 = vector.broadcast %279 : vector<1x128xf32> to vector<16x128xf32>
    %281 = arith.addf %278, %280 : vector<16x128xf32>
    %cst_107 = arith.constant 5.000000e-01 : f32
    %282 = vector.broadcast %cst_107 : f32 to vector<16x128xf32>
    %283 = arith.mulf %282, %281 : vector<16x128xf32>
    %cst_108 = arith.constant 4.471500e-02 : f32
    %284 = vector.broadcast %cst_108 : f32 to vector<16x128xf32>
    %285 = arith.mulf %284, %281 : vector<16x128xf32>
    %286 = arith.mulf %285, %281 : vector<16x128xf32>
    %287 = arith.mulf %286, %281 : vector<16x128xf32>
    %288 = arith.addf %281, %287 : vector<16x128xf32>
    %cst_109 = arith.constant 0.797884583 : f32
    %289 = vector.broadcast %cst_109 : f32 to vector<16x128xf32>
    %290 = arith.mulf %289, %288 : vector<16x128xf32>
    %291 = math.tanh %290 : vector<16x128xf32>
    %cst_110 = arith.constant 1.000000e+00 : f32
    %292 = vector.broadcast %cst_110 : f32 to vector<16x128xf32>
    %293 = arith.addf %292, %291 : vector<16x128xf32>
    %294 = arith.mulf %283, %293 : vector<16x128xf32>
    %295 = arith.truncf %294 : vector<16x128xf32> to vector<16x128xbf16>
    %c0_111 = arith.constant 0 : index
    %c0_112 = arith.constant 0 : index
    %296 = vector.load %arg12[%c0_111, %c0_112] : memref<128x32xbf16, #tpu.memory_space<vmem>>, vector<128x32xbf16>
    %cst_113 = arith.constant dense<0.000000e+00> : vector<16x32xf32>
    %297 = tpu.matmul %295, %296, %cst_113 {dimension_numbers = #tpu.dot_dimension_numbers<[1], [0], [0], [1], [0, 0, 1, 1], [], []>} : vector<16x128xbf16>, vector<128x32xbf16>, vector<16x32xf32> -> vector<16x32xf32>
    %c0_114 = arith.constant 0 : index
    %c0_115 = arith.constant 0 : index
    %298 = vector.load %arg13[%c0_114, %c0_115] : memref<1x32xf32, #tpu.memory_space<vmem>>, vector<1x32xf32>
    %299 = vector.broadcast %298 : vector<1x32xf32> to vector<16x32xf32>
    %300 = arith.addf %297, %299 : vector<16x32xf32>
    %301 = arith.addf %251, %300 : vector<16x32xf32>
    %302 = vector.shape_cast %301 : vector<16x32xf32> to vector<2x8x32xf32>
    %c0_116 = arith.constant 0 : index
    %c0_117 = arith.constant 0 : index
    %c0_118 = arith.constant 0 : index
    %303 = vector.load %arg14[%c0_116, %c0_117, %c0_118] : memref<2x8x32xf32, #tpu.memory_space<vmem>>, vector<2x8x32xf32>
    tpu.vector_store %arg14[%c0_116, %c0_117, %c0_118], %302 {strides = array<i32>} : memref<2x8x32xf32, #tpu.memory_space<vmem>>, vector<2x8x32xf32>,
    return
  }
  func.func @transform_0(%arg0: i32) -> (i32, i32, i32) {
    %c0_i32 = arith.constant 0 : i32
    %c0_i32_0 = arith.constant 0 : i32
    %c0_i32_1 = arith.constant 0 : i32
    return %arg0, %c0_i32, %c0_i32_0 : i32, i32, i32
  }
  func.func @transform_1(%arg0: i32) -> (i32, i32) {
    %c0_i32 = arith.constant 0 : i32
    %c0_i32_0 = arith.constant 0 : i32
    %c0_i32_1 = arith.constant 0 : i32
    return %c0_i32, %c0_i32_0 : i32, i32
  }
  func.func @transform_2(%arg0: i32) -> (i32, i32) {
    %c0_i32 = arith.constant 0 : i32
    %c0_i32_0 = arith.constant 0 : i32
    %c0_i32_1 = arith.constant 0 : i32
    return %c0_i32, %c0_i32_0 : i32, i32
  }
  func.func @transform_3(%arg0: i32) -> (i32, i32) {
    %c0_i32 = arith.constant 0 : i32
    %c0_i32_0 = arith.constant 0 : i32
    %c0_i32_1 = arith.constant 0 : i32
    return %c0_i32, %c0_i32_0 : i32, i32
  }
  func.func @transform_4(%arg0: i32) -> (i32, i32) {
    %c0_i32 = arith.constant 0 : i32
    %c0_i32_0 = arith.constant 0 : i32
    %c0_i32_1 = arith.constant 0 : i32
    return %c0_i32, %c0_i32_0 : i32, i32
  }
  func.func @transform_5(%arg0: i32) -> (i32, i32, i32) {
    %c0_i32 = arith.constant 0 : i32
    %c0_i32_0 = arith.constant 0 : i32
    %c0_i32_1 = arith.constant 0 : i32
    %c0_i32_2 = arith.constant 0 : i32
    return %c0_i32, %c0_i32_0, %c0_i32_1 : i32, i32, i32
  }
  func.func @transform_6(%arg0: i32) -> (i32, i32) {
    %c0_i32 = arith.constant 0 : i32
    %c0_i32_0 = arith.constant 0 : i32
    %c0_i32_1 = arith.constant 0 : i32
    return %c0_i32, %c0_i32_0 : i32, i32
  }
  func.func @transform_7(%arg0: i32) -> (i32, i32) {
    %c0_i32 = arith.constant 0 : i32
    %c0_i32_0 = arith.constant 0 : i32
    %c0_i32_1 = arith.constant 0 : i32
    return %c0_i32, %c0_i32_0 : i32, i32
  }
  func.func @transform_8(%arg0: i32) -> (i32, i32) {
    %c0_i32 = arith.constant 0 : i32
    %c0_i32_0 = arith.constant 0 : i32
    %c0_i32_1 = arith.constant 0 : i32
    return %c0_i32, %c0_i32_0 : i32, i32
  }
  func.func @transform_9(%arg0: i32) -> (i32, i32) {
    %c0_i32 = arith.constant 0 : i32
    %c0_i32_0 = arith.constant 0 : i32
    %c0_i32_1 = arith.constant 0 : i32
    return %c0_i32, %c0_i32_0 : i32, i32
  }
  func.func @transform_10(%arg0: i32) -> (i32, i32) {
    %c0_i32 = arith.constant 0 : i32
    %c0_i32_0 = arith.constant 0 : i32
    %c0_i32_1 = arith.constant 0 : i32
    return %c0_i32, %c0_i32_0 : i32, i32
  }
  func.func @transform_11(%arg0: i32) -> (i32, i32) {
    %c0_i32 = arith.constant 0 : i32
    %c0_i32_0 = arith.constant 0 : i32
    %c0_i32_1 = arith.constant 0 : i32
    return %c0_i32, %c0_i32_0 : i32, i32
  }
  func.func @transform_12(%arg0: i32) -> (i32, i32) {
    %c0_i32 = arith.constant 0 : i32
    %c0_i32_0 = arith.constant 0 : i32
    %c0_i32_1 = arith.constant 0 : i32
    return %c0_i32, %c0_i32_0 : i32, i32
  }
  func.func @transform_13(%arg0: i32) -> (i32, i32, i32) {
    %c0_i32 = arith.constant 0 : i32
    %c0_i32_0 = arith.constant 0 : i32
    %c0_i32_1 = arith.constant 0 : i32
    return %arg0, %c0_i32, %c0_i32_0 : i32, i32, i32
  }
}

</mosaic_0001>

<llo_original>
// kernel: tpu_custom_call.1
$region0: #{tpu_custom_call.1}
  #allocation0 [shape = 'u32[]', space=smem, size = 0x4, offset = 0x4, fixed_abs, tag = 'smem constant byte address 0x4 - core index']
  #allocation1 [shape = 'u32[72,128]{1,0:T(1,128)}', space=vmem, size = 0x9000, scoped, tag = 'internal scratch']
  #allocation2 [shape = 'f32[16,32]{1,0:T(8,128)}', space=vmem, size = 0x2000, scoped, tag = 'scratch operand']
  %s0 = inlined_call_operand.vmem [shape: f32[2,8,32], index: 0, kind: input, shape index: {}]
  %s1 = inlined_call_operand.vmem [shape: f32[1,32], index: 1, kind: input, shape index: {}]
  %s2 = inlined_call_operand.vmem [shape: f32[1,32], index: 2, kind: input, shape index: {}]
  %s3 = inlined_call_operand.vmem [shape: bf16[32,96], index: 3, kind: input, shape index: {}]
  %s4 = inlined_call_operand.vmem [shape: f32[1,96], index: 4, kind: input, shape index: {}]
  %s5 = inlined_call_operand.vmem [shape: bf16[4,8,32], index: 5, kind: input, shape index: {}]
  %s6 = inlined_call_operand.vmem [shape: f32[1,32], index: 6, kind: input, shape index: {}]
  %s7 = inlined_call_operand.vmem [shape: f32[1,32], index: 7, kind: input, shape index: {}]
  %s8 = inlined_call_operand.vmem [shape: f32[1,32], index: 8, kind: input, shape index: {}]
  %s9 = inlined_call_operand.vmem [shape: bf16[32,128], index: 9, kind: input, shape index: {}]
  %s10 = inlined_call_operand.vmem [shape: f32[1,128], index: 10, kind: input, shape index: {}]
  %s11 = inlined_call_operand.vmem [shape: bf16[128,32], index: 11, kind: input, shape index: {}]
  %s12 = inlined_call_operand.vmem [shape: f32[1,32], index: 12, kind: input, shape index: {}]
  %s13 = inlined_call_operand.hbm [shape: f32[2,8,32], index: 13, kind: output, shape index: {}]
  %s14 = sld [smem:[#allocation0]]
  $region62: #{tpu_custom_call.1} parent=0
    _
  %s16 = ssub.s32 1, %s14
  %s17 = scalar_select 0, %s16, %s14
  $region1: #{tpu_custom_call.1} parent=0
    #allocation3 [shape = 'u8[8192]{0}', space=vmem, size = 0x2000, scoped, tag = 'output window, operand 0, single buffered']
    #allocation4 [shape = 's32[1]{0}', space=sflag, size = 0x4, scoped, tag = 'scoped memory for tpu_custom_call.1']
    %18 = vsyncpa [#allocation4], 0
    // Predicated region
    $region2: #{tpu_custom_call.1} parent=1 // pred_check
      _
    $region3: #{tpu_custom_call.1} parent=1 // pred_check_branch
      %20 = sbr.rel (0) target = $region5
    $region4: #{tpu_custom_call.1} parent=1 // pred_region
      _
    $region5: #{tpu_custom_call.1} parent=1 // pred_fallthru
      _
    // Predicated region
    $region6: #{tpu_custom_call.1} parent=1 // pred_check
      _
    $region7: #{tpu_custom_call.1} parent=1 // pred_check_branch
      %22 = sbr.rel (0) target = $region9
    $region8: #{tpu_custom_call.1} parent=1 // pred_region
      _
    $region9: #{tpu_custom_call.1} parent=1 // pred_fallthru
      _
    // Predicated region
    $region10: #{tpu_custom_call.1} parent=1 // pred_check
      _
    $region11: #{tpu_custom_call.1} parent=1 // pred_check_branch
      %24 = sbr.rel (0) target = $region13
    $region12: #{tpu_custom_call.1} parent=1 // pred_region
      _
    $region13: #{tpu_custom_call.1} parent=1 // pred_fallthru
      _
    // Predicated region
    $region14: #{tpu_custom_call.1} parent=1 // pred_check
      _
    $region15: #{tpu_custom_call.1} parent=1 // pred_check_branch
      %26 = sbr.rel (0) target = $region17
    $region16: #{tpu_custom_call.1} parent=1 // pred_region
      _
    $region17: #{tpu_custom_call.1} parent=1 // pred_fallthru
      _
    // Predicated region
    $region18: #{tpu_custom_call.1} parent=1 // pred_check
      _
    $region19: #{tpu_custom_call.1} parent=1 // pred_check_branch
      %28 = sbr.rel (0) target = $region21
    $region20: #{tpu_custom_call.1} parent=1 // pred_region
      _
    $region21: #{tpu_custom_call.1} parent=1 // pred_fallthru
      _
    // Predicated region
    $region22: #{tpu_custom_call.1} parent=1 // pred_check
      _
    $region23: #{tpu_custom_call.1} parent=1 // pred_check_branch
      %30 = sbr.rel (0) target = $region25
    $region24: #{tpu_custom_call.1} parent=1 // pred_region
      _
    $region25: #{tpu_custom_call.1} parent=1 // pred_fallthru
      _
    // Predicated region
    $region26: #{tpu_custom_call.1} parent=1 // pred_check
      _
    $region27: #{tpu_custom_call.1} parent=1 // pred_check_branch
      %32 = sbr.rel (0) target = $region29
    $region28: #{tpu_custom_call.1} parent=1 // pred_region
      _
    $region29: #{tpu_custom_call.1} parent=1 // pred_fallthru
      _
    // Predicated region
    $region30: #{tpu_custom_call.1} parent=1 // pred_check
      _
    $region31: #{tpu_custom_call.1} parent=1 // pred_check_branch
      %34 = sbr.rel (0) target = $region33
    $region32: #{tpu_custom_call.1} parent=1 // pred_region
      _
    $region33: #{tpu_custom_call.1} parent=1 // pred_fallthru
      _
    // Predicated region
    $region34: #{tpu_custom_call.1} parent=1 // pred_check
      _
    $region35: #{tpu_custom_call.1} parent=1 // pred_check_branch
      %36 = sbr.rel (0) target = $region37
    $region36: #{tpu_custom_call.1} parent=1 // pred_region
      _
    $region37: #{tpu_custom_call.1} parent=1 // pred_fallthru
      _
    // Predicated region
    $region38: #{tpu_custom_call.1} parent=1 // pred_check
      _
    $region39: #{tpu_custom_call.1} parent=1 // pred_check_branch
      %38 = sbr.rel (0) target = $region41
    $region40: #{tpu_custom_call.1} parent=1 // pred_region
      _
    $region41: #{tpu_custom_call.1} parent=1 // pred_fallthru
      _
    // Predicated region
    $region42: #{tpu_custom_call.1} parent=1 // pred_check
      _
    $region43: #{tpu_custom_call.1} parent=1 // pred_check_branch
      %40 = sbr.rel (0) target = $region45
    $region44: #{tpu_custom_call.1} parent=1 // pred_region
      _
    $region45: #{tpu_custom_call.1} parent=1 // pred_fallthru
      _
    // Predicated region
    $region46: #{tpu_custom_call.1} parent=1 // pred_check
      _
    $region47: #{tpu_custom_call.1} parent=1 // pred_check_branch
      %42 = sbr.rel (0) target = $region49
    $region48: #{tpu_custom_call.1} parent=1 // pred_region
      _
    $region49: #{tpu_custom_call.1} parent=1 // pred_fallthru
      _
    // Predicated region
    $region50: #{tpu_custom_call.1} parent=1 // pred_check
      _
    $region51: #{tpu_custom_call.1} parent=1 // pred_check_branch
      %44 = sbr.rel (0) target = $region53
    $region52: #{tpu_custom_call.1} parent=1 // pred_region
      _
    $region53: #{tpu_custom_call.1} parent=1 // pred_fallthru
      _
    %v46 = vld [vmem:[%s0] sm:$0xff]
    %v47 = vld [vmem:[%s0 + $0x8] sm:$0xff]
    %v48 = vld [vmem:[%s1] sm:$0x1]
    %v49 = vld [vmem:[%s2] sm:$0x1]
    %vm50 = vcmask 261120
    %v51 = vsel %vm50, %v46, 0.0
    %52 = vadd.xlane.f32.xlu0 %v51
    %v53 = vpop.xlane.xlu0 %52
    %v54 = vsel %vm50, %v47, 0.0
    %55 = vadd.xlane.f32.xlu0 %v54
    %v56 = vpop.xlane.xlu0 %55
    %v57 = vrcp.pop 32.0
    %v58 = vmul.f32 32.0, %v57
    %v59 = vsub.f32 1.0, %v58
    %v60 = vmul.f32 %v57, %v59
    %v61 = vadd.f32 %v57, %v60
    %vm62 = vweird.f32 %v57
    %v63 = vsel %vm62, %v57, %v61
    %v64 = vmul.f32 %v53, %v63
    %v65 = vmul.f32 %v56, %v63
    %v66 = vsub.f32 %v46, %v64
    %v67 = vsub.f32 %v47, %v65
    %v68 = vmul.f32 %v66, %v66
    %v69 = vmul.f32 %v67, %v67
    %v70 = vsel %vm50, %v68, 0.0
    %71 = vadd.xlane.f32.xlu0 %v70
    %v72 = vpop.xlane.xlu0 %71
    %v73 = vsel %vm50, %v69, 0.0
    %74 = vadd.xlane.f32.xlu0 %v73
    %v75 = vpop.xlane.xlu0 %74
    %v76 = vmul.f32 %v72, %v63
    %v77 = vmul.f32 %v75, %v63
    %v78 = vadd.f32 %v76, 1e-05
    %v79 = vadd.f32 %v77, 1e-05
    %v80 = vrsqrt.pop %v78
    %v81 = vmul.f32 %v80, %v78
    %v82 = vmul.f32 %v81, %v80
    %v83 = vmul.f32 0.5, %v82
    %v84 = vsub.f32 1.5, %v83
    %v85 = vmul.f32 %v80, %v84
    %vm86 = vweird.f32 %v78
    %vm87 = vweird.f32 %v80
    %vm88 = vmor %vm86, %vm87
    %v89 = vsel %vm88, %v80, %v85
    %v90 = vrsqrt.pop %v79
    %v91 = vmul.f32 %v90, %v79
    %v92 = vmul.f32 %v91, %v90
    %v93 = vmul.f32 0.5, %v92
    %v94 = vsub.f32 1.5, %v93
    %v95 = vmul.f32 %v90, %v94
    %vm96 = vweird.f32 %v79
    %vm97 = vweird.f32 %v90
    %vm98 = vmor %vm96, %vm97
    %v99 = vsel %vm98, %v90, %v95
    %v100 = vmul.f32 %v66, %v89
    %v101 = vmul.f32 %v67, %v99
    %v103 = vperm.slane %v48, 0
    %v105 = vmul.f32 %v100, %v103
    %v106 = vmul.f32 %v101, %v103
    %v108 = vperm.slane %v49, 0
    %v110 = vadd.f32 %v105, %v108
    %v111 = vadd.f32 %v106, %v108
    %v112 = vpack.c.bf16 %v111, %v110
    %v113 = vld [vmem:[%s3] sm:$0xf]
    %v114 = vld [vmem:[%s3 + $0x4] sm:$0xf]
    %v115 = vld [vmem:[%s3 + $0x8] sm:$0xf]
    %v116 = vld [vmem:[%s3 + $0xc] sm:$0xf]
    %v117 = vld [vmem:[%s4] sm:$0x1]
    %v119 = vperm.slane %v117, 0
    %v125 = vunpack.c.l.b16 %v113
    %v126 = vunpack.c.l.b16 %v114
    %v127 = vunpack.c.l.b16 %v115
    %v128 = vunpack.c.l.b16 %v116
    %v129 = vpack.c.b16 %v126, %v125
    %v130 = vpack.c.b16 %v128, %v127
    %v134 = vsel %vm50, %v112, 0
    %136 = vmatpush.bf16.msra.mxu0 0
    %137 = vmatpush.bf16.msra.mxu0 0
    %138 = vmatpush.bf16.msra.mxu0 0
    %139 = vmatpush.bf16.msra.mxu0 0
    %140 = vmatpush.bf16.msra.mxu0 0
    %141 = vmatpush.bf16.msra.mxu0 0
    %142 = vmatpush.bf16.msra.mxu0 %v130
    %143 = vmatpush.bf16.msra.mxu0 %v129
    %144 = vmatmul.bf16.gmra.mxu0 %v134
    %v145 = vpop.f32.mrf.mxu0
    %v146 = vadd.f32 %v119, %v145
    %v147 = vpop.f32.mrf.mxu0
    %v148 = vadd.f32 %v119, %v147
    %149 = vdwg.mxu0
    %v150 = vlaneseq
    %v151 = vshrl.u32 %v150, 7
    %v152 = vlaneseq
    %v153 = vand.u32 %v152, 127
    %vm154 = vcmp.ge.s32.totalorder %v151, %v153
    %v155 = vpack.c.bf16 %v146, %v146
    %157 = vrot.lane.b32.xlu0 %v155, 96
    %v158 = vpop.permute.xlu0 %157
    %vm159 = vcmask 64512
    %v161 = vsel %vm159, %v155, 0
    %v164 = vsel %vm159, %v158, 0
    %166 = vmatpush.bf16.xpose.msra.mxu0 0
    %167 = vmatpush.bf16.xpose.msra.mxu0 0
    %168 = vmatpush.bf16.xpose.msra.mxu0 0
    %169 = vmatpush.bf16.xpose.msra.mxu0 0
    %170 = vmatpush.bf16.xpose.msra.mxu0 0
    %171 = vmatpush.bf16.xpose.msra.mxu0 0
    %172 = vmatpush.bf16.xpose.msra.mxu0 0
    %173 = vmatpush.bf16.xpose.msra.mxu0 %v164
    %174 = vmatmul.bf16.gmra.mxu0 %v161
    %v175 = vpop.f32.mrf.mxu0
    %v176 = vadd.f32 0.0, %v175
    %v177 = vpop.f32.mrf.mxu0
    %178 = vdwg.mxu0
    %v179 = vsel %vm154, %v176, -1e+30
    %v180 = vsel %vm159, %v179, -inf
    %181 = vmax.xlane.f32.xlu0 %v180
    %v182 = vpop.xlane.xlu0 %181
    %v183 = vsub.f32 %v179, %v182
    %v184 = vmul.f32 %v183, 1.442695
    %v185 = vpow.pop %v184
    %v186 = vsel %vm159, %v185, 0.0
    %187 = vadd.xlane.f32.xlu0 %v186
    %v188 = vpop.xlane.xlu0 %187
    %v189 = vrcp.pop %v188
    %v190 = vmul.f32 %v185, %v189
    %v191 = vpack.c.bf16 %v190, %v190
    %192 = vrot.lane.b32.xlu0 %v155, 64
    %v193 = vpop.permute.xlu0 %192
    %v195 = vsel %vm159, %v191, 0
    %vm197 = vcmask 1043456
    %v199 = vsel %vm197, %v193, 0
    %201 = vmatpush.bf16.msra.mxu0 0
    %202 = vmatpush.bf16.msra.mxu0 0
    %203 = vmatpush.bf16.msra.mxu0 0
    %204 = vmatpush.bf16.msra.mxu0 0
    %205 = vmatpush.bf16.msra.mxu0 0
    %206 = vmatpush.bf16.msra.mxu0 0
    %207 = vmatpush.bf16.msra.mxu0 0
    %208 = vmatpush.bf16.msra.mxu0 %v199
    %209 = vmatmul.bf16.gmra.mxu0 %v195
    %v210 = vpop.f32.mrf.mxu0
    %v211 = vadd.f32 0.0, %v210
    %v212 = vpop.f32.mrf.mxu0
    %213 = vdwg.mxu0
    %v214 = vpack.c.bf16 %v211, %v211
    %v215 = vld [vmem:[%s5] sm:$0xf]
    %216 = vrot.lane.b32.xlu0 %v155, 120
    %v217 = vpop.permute.xlu0 %216
    %218 = vrot.lane.b32.xlu0 %v155, 88
    %v219 = vpop.permute.xlu0 %218
    %v221 = vsel %vm159, %v217, 0
    %v224 = vsel %vm159, %v219, 0
    %226 = vmatpush.bf16.xpose.msra.mxu0 0
    %227 = vmatpush.bf16.xpose.msra.mxu0 0
    %228 = vmatpush.bf16.xpose.msra.mxu0 0
    %229 = vmatpush.bf16.xpose.msra.mxu0 0
    %230 = vmatpush.bf16.xpose.msra.mxu0 0
    %231 = vmatpush.bf16.xpose.msra.mxu0 0
    %232 = vmatpush.bf16.xpose.msra.mxu0 0
    %233 = vmatpush.bf16.xpose.msra.mxu0 %v224
    %234 = vmatmul.bf16.gmra.mxu0 %v221
    %v235 = vpop.f32.mrf.mxu0
    %v236 = vadd.f32 0.0, %v235
    %v237 = vpop.f32.mrf.mxu0
    %238 = vdwg.mxu0
    %v239 = vsel %vm154, %v236, -1e+30
    %v240 = vsel %vm159, %v239, -inf
    %241 = vmax.xlane.f32.xlu0 %v240
    %v242 = vpop.xlane.xlu0 %241
    %v243 = vsub.f32 %v239, %v242
    %v244 = vmul.f32 %v243, 1.442695
    %v245 = vpow.pop %v244
    %v246 = vsel %vm159, %v245, 0.0
    %247 = vadd.xlane.f32.xlu0 %v246
    %v248 = vpop.xlane.xlu0 %247
    %v249 = vrcp.pop %v248
    %v250 = vmul.f32 %v245, %v249
    %v251 = vpack.c.bf16 %v250, %v250
    %252 = vrot.lane.b32.xlu0 %v155, 56
    %v253 = vpop.permute.xlu0 %252
    %v255 = vsel %vm159, %v251, 0
    %v258 = vsel %vm197, %v253, 0
    %260 = vmatpush.bf16.msra.mxu0 0
    %261 = vmatpush.bf16.msra.mxu0 0
    %262 = vmatpush.bf16.msra.mxu0 0
    %263 = vmatpush.bf16.msra.mxu0 0
    %264 = vmatpush.bf16.msra.mxu0 0
    %265 = vmatpush.bf16.msra.mxu0 0
    %266 = vmatpush.bf16.msra.mxu0 0
    %267 = vmatpush.bf16.msra.mxu0 %v258
    %268 = vmatmul.bf16.gmra.mxu0 %v255
    %v269 = vpop.f32.mrf.mxu0
    %v270 = vadd.f32 0.0, %v269
    %v271 = vpop.f32.mrf.mxu0
    %272 = vdwg.mxu0
    %v273 = vpack.c.bf16 %v270, %v270
    %s274 = scalar_lea.vmem %s5, 4
    %v275 = vld [vmem:[%s274] sm:$0xf]
    %v277 = vsel %vm159, %v273, 0
    %v280 = vsel %vm197, %v275, 0
    %282 = vmatpush.bf16.msra.mxu0 0
    %283 = vmatpush.bf16.msra.mxu0 0
    %284 = vmatpush.bf16.msra.mxu0 0
    %285 = vmatpush.bf16.msra.mxu0 0
    %286 = vmatpush.bf16.msra.mxu0 0
    %287 = vmatpush.bf16.msra.mxu0 0
    %288 = vmatpush.bf16.msra.mxu0 0
    %289 = vmatpush.bf16.msra.mxu0 %v280
    %290 = vmatmul.bf16.gmra.mxu0 %v277
    %v291 = vpop.f32.mrf.mxu0
    %v292 = vadd.f32 0.0, %v291
    %v293 = vpop.f32.mrf.mxu0
    %294 = vdwg.mxu0
    %v296 = vsel %vm159, %v214, 0
    %v299 = vsel %vm197, %v215, 0
    %301 = vmatpush.bf16.msra.mxu0 0
    %302 = vmatpush.bf16.msra.mxu0 0
    %303 = vmatpush.bf16.msra.mxu0 0
    %304 = vmatpush.bf16.msra.mxu0 0
    %305 = vmatpush.bf16.msra.mxu0 0
    %306 = vmatpush.bf16.msra.mxu0 0
    %307 = vmatpush.bf16.msra.mxu0 0
    %308 = vmatpush.bf16.msra.mxu0 %v299
    %309 = vmatmul.bf16.gmra.mxu0 %v296
    %v310 = vpop.f32.mrf.mxu0
    %v311 = vadd.f32 %v292, %v310
    %v312 = vpop.f32.mrf.mxu0
    %313 = vdwg.mxu0
    %314 = vrot.lane.b32.xlu0 %v155, 112
    %v315 = vpop.permute.xlu0 %314
    %316 = vrot.lane.b32.xlu0 %v155, 80
    %v317 = vpop.permute.xlu0 %316
    %v319 = vsel %vm159, %v315, 0
    %v322 = vsel %vm159, %v317, 0
    %324 = vmatpush.bf16.xpose.msra.mxu0 0
    %325 = vmatpush.bf16.xpose.msra.mxu0 0
    %326 = vmatpush.bf16.xpose.msra.mxu0 0
    %327 = vmatpush.bf16.xpose.msra.mxu0 0
    %328 = vmatpush.bf16.xpose.msra.mxu0 0
    %329 = vmatpush.bf16.xpose.msra.mxu0 0
    %330 = vmatpush.bf16.xpose.msra.mxu0 0
    %331 = vmatpush.bf16.xpose.msra.mxu0 %v322
    %332 = vmatmul.bf16.gmra.mxu0 %v319
    %v333 = vpop.f32.mrf.mxu0
    %v334 = vadd.f32 0.0, %v333
    %v335 = vpop.f32.mrf.mxu0
    %336 = vdwg.mxu0
    %v337 = vsel %vm154, %v334, -1e+30
    %v338 = vsel %vm159, %v337, -inf
    %339 = vmax.xlane.f32.xlu0 %v338
    %v340 = vpop.xlane.xlu0 %339
    %v341 = vsub.f32 %v337, %v340
    %v342 = vmul.f32 %v341, 1.442695
    %v343 = vpow.pop %v342
    %v344 = vsel %vm159, %v343, 0.0
    %345 = vadd.xlane.f32.xlu0 %v344
    %v346 = vpop.xlane.xlu0 %345
    %v347 = vrcp.pop %v346
    %v348 = vmul.f32 %v343, %v347
    %v349 = vpack.c.bf16 %v348, %v348
    %350 = vrot.lane.b32.xlu0 %v155, 48
    %v351 = vpop.permute.xlu0 %350
    %v353 = vsel %vm159, %v349, 0
    %v356 = vsel %vm197, %v351, 0
    %358 = vmatpush.bf16.msra.mxu0 0
    %359 = vmatpush.bf16.msra.mxu0 0
    %360 = vmatpush.bf16.msra.mxu0 0
    %361 = vmatpush.bf16.msra.mxu0 0
    %362 = vmatpush.bf16.msra.mxu0 0
    %363 = vmatpush.bf16.msra.mxu0 0
    %364 = vmatpush.bf16.msra.mxu0 0
    %365 = vmatpush.bf16.msra.mxu0 %v356
    %366 = vmatmul.bf16.gmra.mxu0 %v353
    %v367 = vpop.f32.mrf.mxu0
    %v368 = vadd.f32 0.0, %v367
    %v369 = vpop.f32.mrf.mxu0
    %370 = vdwg.mxu0
    %v371 = vpack.c.bf16 %v368, %v368
    %s372 = scalar_lea.vmem %s5, 8
    %v373 = vld [vmem:[%s372] sm:$0xf]
    %v375 = vsel %vm159, %v371, 0
    %v378 = vsel %vm197, %v373, 0
    %380 = vmatpush.bf16.msra.mxu0 0
    %381 = vmatpush.bf16.msra.mxu0 0
    %382 = vmatpush.bf16.msra.mxu0 0
    %383 = vmatpush.bf16.msra.mxu0 0
    %384 = vmatpush.bf16.msra.mxu0 0
    %385 = vmatpush.bf16.msra.mxu0 0
    %386 = vmatpush.bf16.msra.mxu0 0
    %387 = vmatpush.bf16.msra.mxu0 %v378
    %388 = vmatmul.bf16.gmra.mxu0 %v375
    %v389 = vpop.f32.mrf.mxu0
    %v390 = vadd.f32 0.0, %v389
    %v391 = vpop.f32.mrf.mxu0
    %392 = vdwg.mxu0
    %v393 = vadd.f32 %v311, %v390
    %394 = vrot.lane.b32.xlu0 %v155, 104
    %v395 = vpop.permute.xlu0 %394
    %396 = vrot.lane.b32.xlu0 %v155, 72
    %v397 = vpop.permute.xlu0 %396
    %v399 = vsel %vm159, %v395, 0
    %v402 = vsel %vm159, %v397, 0
    %404 = vmatpush.bf16.xpose.msra.mxu0 0
    %405 = vmatpush.bf16.xpose.msra.mxu0 0
    %406 = vmatpush.bf16.xpose.msra.mxu0 0
    %407 = vmatpush.bf16.xpose.msra.mxu0 0
    %408 = vmatpush.bf16.xpose.msra.mxu0 0
    %409 = vmatpush.bf16.xpose.msra.mxu0 0
    %410 = vmatpush.bf16.xpose.msra.mxu0 0
    %411 = vmatpush.bf16.xpose.msra.mxu0 %v402
    %412 = vmatmul.bf16.gmra.mxu0 %v399
    %v413 = vpop.f32.mrf.mxu0
    %v414 = vadd.f32 0.0, %v413
    %v415 = vpop.f32.mrf.mxu0
    %416 = vdwg.mxu0
    %v417 = vsel %vm154, %v414, -1e+30
    %v418 = vsel %vm159, %v417, -inf
    %419 = vmax.xlane.f32.xlu0 %v418
    %v420 = vpop.xlane.xlu0 %419
    %v421 = vsub.f32 %v417, %v420
    %v422 = vmul.f32 %v421, 1.442695
    %v423 = vpow.pop %v422
    %v424 = vsel %vm159, %v423, 0.0
    %425 = vadd.xlane.f32.xlu0 %v424
    %v426 = vpop.xlane.xlu0 %425
    %v427 = vrcp.pop %v426
    %v428 = vmul.f32 %v423, %v427
    %v429 = vpack.c.bf16 %v428, %v428
    %430 = vrot.lane.b32.xlu0 %v155, 40
    %v431 = vpop.permute.xlu0 %430
    %v433 = vsel %vm159, %v429, 0
    %v436 = vsel %vm197, %v431, 0
    %438 = vmatpush.bf16.msra.mxu0 0
    %439 = vmatpush.bf16.msra.mxu0 0
    %440 = vmatpush.bf16.msra.mxu0 0
    %441 = vmatpush.bf16.msra.mxu0 0
    %442 = vmatpush.bf16.msra.mxu0 0
    %443 = vmatpush.bf16.msra.mxu0 0
    %444 = vmatpush.bf16.msra.mxu0 0
    %445 = vmatpush.bf16.msra.mxu0 %v436
    %446 = vmatmul.bf16.gmra.mxu0 %v433
    %v447 = vpop.f32.mrf.mxu0
    %v448 = vadd.f32 0.0, %v447
    %v449 = vpop.f32.mrf.mxu0
    %450 = vdwg.mxu0
    %v451 = vpack.c.bf16 %v448, %v448
    %s452 = scalar_lea.vmem %s5, 12
    %v453 = vld [vmem:[%s452] sm:$0xf]
    %v455 = vsel %vm159, %v451, 0
    %v458 = vsel %vm197, %v453, 0
    %460 = vmatpush.bf16.msra.mxu0 0
    %461 = vmatpush.bf16.msra.mxu0 0
    %462 = vmatpush.bf16.msra.mxu0 0
    %463 = vmatpush.bf16.msra.mxu0 0
    %464 = vmatpush.bf16.msra.mxu0 0
    %465 = vmatpush.bf16.msra.mxu0 0
    %466 = vmatpush.bf16.msra.mxu0 0
    %467 = vmatpush.bf16.msra.mxu0 %v458
    %468 = vmatmul.bf16.gmra.mxu0 %v455
    %v469 = vpop.f32.mrf.mxu0
    %v470 = vadd.f32 0.0, %v469
    %v471 = vpop.f32.mrf.mxu0
    %472 = vdwg.mxu0
    %v473 = vadd.f32 %v393, %v470
    %474 = vst.msk [vmem:[#allocation2] sm:$0xff] %vm50, %v473
    %v475 = vpack.c.bf16 %v148, %v148
    %477 = vrot.lane.b32.xlu0 %v475, 96
    %v478 = vpop.permute.xlu0 %477
    %v480 = vsel %vm159, %v475, 0
    %v483 = vsel %vm159, %v478, 0
    %485 = vmatpush.bf16.xpose.msra.mxu0 0
    %486 = vmatpush.bf16.xpose.msra.mxu0 0
    %487 = vmatpush.bf16.xpose.msra.mxu0 0
    %488 = vmatpush.bf16.xpose.msra.mxu0 0
    %489 = vmatpush.bf16.xpose.msra.mxu0 0
    %490 = vmatpush.bf16.xpose.msra.mxu0 0
    %491 = vmatpush.bf16.xpose.msra.mxu0 0
    %492 = vmatpush.bf16.xpose.msra.mxu0 %v483
    %493 = vmatmul.bf16.gmra.mxu0 %v480
    %v494 = vpop.f32.mrf.mxu0
    %v495 = vadd.f32 0.0, %v494
    %v496 = vpop.f32.mrf.mxu0
    %497 = vdwg.mxu0
    %v498 = vsel %vm154, %v495, -1e+30
    %v499 = vsel %vm159, %v498, -inf
    %500 = vmax.xlane.f32.xlu0 %v499
    %v501 = vpop.xlane.xlu0 %500
    %v502 = vsub.f32 %v498, %v501
    %v503 = vmul.f32 %v502, 1.442695
    %v504 = vpow.pop %v503
    %v505 = vsel %vm159, %v504, 0.0
    %506 = vadd.xlane.f32.xlu0 %v505
    %v507 = vpop.xlane.xlu0 %506
    %v508 = vrcp.pop %v507
    %v509 = vmul.f32 %v504, %v508
    %v510 = vpack.c.bf16 %v509, %v509
    %511 = vrot.lane.b32.xlu0 %v475, 64
    %v512 = vpop.permute.xlu0 %511
    %v514 = vsel %vm159, %v510, 0
    %v517 = vsel %vm197, %v512, 0
    %519 = vmatpush.bf16.msra.mxu0 0
    %520 = vmatpush.bf16.msra.mxu0 0
    %521 = vmatpush.bf16.msra.mxu0 0
    %522 = vmatpush.bf16.msra.mxu0 0
    %523 = vmatpush.bf16.msra.mxu0 0
    %524 = vmatpush.bf16.msra.mxu0 0
    %525 = vmatpush.bf16.msra.mxu0 0
    %526 = vmatpush.bf16.msra.mxu0 %v517
    %527 = vmatmul.bf16.gmra.mxu0 %v514
    %v528 = vpop.f32.mrf.mxu0
    %v529 = vadd.f32 0.0, %v528
    %v530 = vpop.f32.mrf.mxu0
    %531 = vdwg.mxu0
    %v532 = vpack.c.bf16 %v529, %v529
    %v533 = vld [vmem:[%s5] sm:$0xf]
    %534 = vrot.lane.b32.xlu0 %v475, 120
    %v535 = vpop.permute.xlu0 %534
    %536 = vrot.lane.b32.xlu0 %v475, 88
    %v537 = vpop.permute.xlu0 %536
    %v539 = vsel %vm159, %v535, 0
    %v542 = vsel %vm159, %v537, 0
    %544 = vmatpush.bf16.xpose.msra.mxu0 0
    %545 = vmatpush.bf16.xpose.msra.mxu0 0
    %546 = vmatpush.bf16.xpose.msra.mxu0 0
    %547 = vmatpush.bf16.xpose.msra.mxu0 0
    %548 = vmatpush.bf16.xpose.msra.mxu0 0
    %549 = vmatpush.bf16.xpose.msra.mxu0 0
    %550 = vmatpush.bf16.xpose.msra.mxu0 0
    %551 = vmatpush.bf16.xpose.msra.mxu0 %v542
    %552 = vmatmul.bf16.gmra.mxu0 %v539
    %v553 = vpop.f32.mrf.mxu0
    %v554 = vadd.f32 0.0, %v553
    %v555 = vpop.f32.mrf.mxu0
    %556 = vdwg.mxu0
    %v557 = vsel %vm154, %v554, -1e+30
    %v558 = vsel %vm159, %v557, -inf
    %559 = vmax.xlane.f32.xlu0 %v558
    %v560 = vpop.xlane.xlu0 %559
    %v561 = vsub.f32 %v557, %v560
    %v562 = vmul.f32 %v561, 1.442695
    %v563 = vpow.pop %v562
    %v564 = vsel %vm159, %v563, 0.0
    %565 = vadd.xlane.f32.xlu0 %v564
    %v566 = vpop.xlane.xlu0 %565
    %v567 = vrcp.pop %v566
    %v568 = vmul.f32 %v563, %v567
    %v569 = vpack.c.bf16 %v568, %v568
    %570 = vrot.lane.b32.xlu0 %v475, 56
    %v571 = vpop.permute.xlu0 %570
    %v573 = vsel %vm159, %v569, 0
    %v576 = vsel %vm197, %v571, 0
    %578 = vmatpush.bf16.msra.mxu0 0
    %579 = vmatpush.bf16.msra.mxu0 0
    %580 = vmatpush.bf16.msra.mxu0 0
    %581 = vmatpush.bf16.msra.mxu0 0
    %582 = vmatpush.bf16.msra.mxu0 0
    %583 = vmatpush.bf16.msra.mxu0 0
    %584 = vmatpush.bf16.msra.mxu0 0
    %585 = vmatpush.bf16.msra.mxu0 %v576
    %586 = vmatmul.bf16.gmra.mxu0 %v573
    %v587 = vpop.f32.mrf.mxu0
    %v588 = vadd.f32 0.0, %v587
    %v589 = vpop.f32.mrf.mxu0
    %590 = vdwg.mxu0
    %v591 = vpack.c.bf16 %v588, %v588
    %v592 = vld [vmem:[%s274] sm:$0xf]
    %v594 = vsel %vm159, %v591, 0
    %v597 = vsel %vm197, %v592, 0
    %599 = vmatpush.bf16.msra.mxu0 0
    %600 = vmatpush.bf16.msra.mxu0 0
    %601 = vmatpush.bf16.msra.mxu0 0
    %602 = vmatpush.bf16.msra.mxu0 0
    %603 = vmatpush.bf16.msra.mxu0 0
    %604 = vmatpush.bf16.msra.mxu0 0
    %605 = vmatpush.bf16.msra.mxu0 0
    %606 = vmatpush.bf16.msra.mxu0 %v597
    %607 = vmatmul.bf16.gmra.mxu0 %v594
    %v608 = vpop.f32.mrf.mxu0
    %v609 = vadd.f32 0.0, %v608
    %v610 = vpop.f32.mrf.mxu0
    %611 = vdwg.mxu0
    %v613 = vsel %vm159, %v532, 0
    %v616 = vsel %vm197, %v533, 0
    %618 = vmatpush.bf16.msra.mxu0 0
    %619 = vmatpush.bf16.msra.mxu0 0
    %620 = vmatpush.bf16.msra.mxu0 0
    %621 = vmatpush.bf16.msra.mxu0 0
    %622 = vmatpush.bf16.msra.mxu0 0
    %623 = vmatpush.bf16.msra.mxu0 0
    %624 = vmatpush.bf16.msra.mxu0 0
    %625 = vmatpush.bf16.msra.mxu0 %v616
    %626 = vmatmul.bf16.gmra.mxu0 %v613
    %v627 = vpop.f32.mrf.mxu0
    %v628 = vadd.f32 %v609, %v627
    %v629 = vpop.f32.mrf.mxu0
    %630 = vdwg.mxu0
    %631 = vrot.lane.b32.xlu0 %v475, 112
    %v632 = vpop.permute.xlu0 %631
    %633 = vrot.lane.b32.xlu0 %v475, 80
    %v634 = vpop.permute.xlu0 %633
    %v636 = vsel %vm159, %v632, 0
    %v639 = vsel %vm159, %v634, 0
    %641 = vmatpush.bf16.xpose.msra.mxu0 0
    %642 = vmatpush.bf16.xpose.msra.mxu0 0
    %643 = vmatpush.bf16.xpose.msra.mxu0 0
    %644 = vmatpush.bf16.xpose.msra.mxu0 0
    %645 = vmatpush.bf16.xpose.msra.mxu0 0
    %646 = vmatpush.bf16.xpose.msra.mxu0 0
    %647 = vmatpush.bf16.xpose.msra.mxu0 0
    %648 = vmatpush.bf16.xpose.msra.mxu0 %v639
    %649 = vmatmul.bf16.gmra.mxu0 %v636
    %v650 = vpop.f32.mrf.mxu0
    %v651 = vadd.f32 0.0, %v650
    %v652 = vpop.f32.mrf.mxu0
    %653 = vdwg.mxu0
    %v654 = vsel %vm154, %v651, -1e+30
    %v655 = vsel %vm159, %v654, -inf
    %656 = vmax.xlane.f32.xlu0 %v655
    %v657 = vpop.xlane.xlu0 %656
    %v658 = vsub.f32 %v654, %v657
    %v659 = vmul.f32 %v658, 1.442695
    %v660 = vpow.pop %v659
    %v661 = vsel %vm159, %v660, 0.0
    %662 = vadd.xlane.f32.xlu0 %v661
    %v663 = vpop.xlane.xlu0 %662
    %v664 = vrcp.pop %v663
    %v665 = vmul.f32 %v660, %v664
    %v666 = vpack.c.bf16 %v665, %v665
    %667 = vrot.lane.b32.xlu0 %v475, 48
    %v668 = vpop.permute.xlu0 %667
    %v670 = vsel %vm159, %v666, 0
    %v673 = vsel %vm197, %v668, 0
    %675 = vmatpush.bf16.msra.mxu0 0
    %676 = vmatpush.bf16.msra.mxu0 0
    %677 = vmatpush.bf16.msra.mxu0 0
    %678 = vmatpush.bf16.msra.mxu0 0
    %679 = vmatpush.bf16.msra.mxu0 0
    %680 = vmatpush.bf16.msra.mxu0 0
    %681 = vmatpush.bf16.msra.mxu0 0
    %682 = vmatpush.bf16.msra.mxu0 %v673
    %683 = vmatmul.bf16.gmra.mxu0 %v670
    %v684 = vpop.f32.mrf.mxu0
    %v685 = vadd.f32 0.0, %v684
    %v686 = vpop.f32.mrf.mxu0
    %687 = vdwg.mxu0
    %v688 = vpack.c.bf16 %v685, %v685
    %v689 = vld [vmem:[%s372] sm:$0xf]
    %v691 = vsel %vm159, %v688, 0
    %v694 = vsel %vm197, %v689, 0
    %696 = vmatpush.bf16.msra.mxu0 0
    %697 = vmatpush.bf16.msra.mxu0 0
    %698 = vmatpush.bf16.msra.mxu0 0
    %699 = vmatpush.bf16.msra.mxu0 0
    %700 = vmatpush.bf16.msra.mxu0 0
    %701 = vmatpush.bf16.msra.mxu0 0
    %702 = vmatpush.bf16.msra.mxu0 0
    %703 = vmatpush.bf16.msra.mxu0 %v694
    %704 = vmatmul.bf16.gmra.mxu0 %v691
    %v705 = vpop.f32.mrf.mxu0
    %v706 = vadd.f32 0.0, %v705
    %v707 = vpop.f32.mrf.mxu0
    %708 = vdwg.mxu0
    %v709 = vadd.f32 %v628, %v706
    %710 = vrot.lane.b32.xlu0 %v475, 104
    %v711 = vpop.permute.xlu0 %710
    %712 = vrot.lane.b32.xlu0 %v475, 72
    %v713 = vpop.permute.xlu0 %712
    %v715 = vsel %vm159, %v711, 0
    %v718 = vsel %vm159, %v713, 0
    %720 = vmatpush.bf16.xpose.msra.mxu0 0
    %721 = vmatpush.bf16.xpose.msra.mxu0 0
    %722 = vmatpush.bf16.xpose.msra.mxu0 0
    %723 = vmatpush.bf16.xpose.msra.mxu0 0
    %724 = vmatpush.bf16.xpose.msra.mxu0 0
    %725 = vmatpush.bf16.xpose.msra.mxu0 0
    %726 = vmatpush.bf16.xpose.msra.mxu0 0
    %727 = vmatpush.bf16.xpose.msra.mxu0 %v718
    %728 = vmatmul.bf16.gmra.mxu0 %v715
    %v729 = vpop.f32.mrf.mxu0
    %v730 = vadd.f32 0.0, %v729
    %v731 = vpop.f32.mrf.mxu0
    %732 = vdwg.mxu0
    %v733 = vsel %vm154, %v730, -1e+30
    %v734 = vsel %vm159, %v733, -inf
    %735 = vmax.xlane.f32.xlu0 %v734
    %v736 = vpop.xlane.xlu0 %735
    %v737 = vsub.f32 %v733, %v736
    %v738 = vmul.f32 %v737, 1.442695
    %v739 = vpow.pop %v738
    %v740 = vsel %vm159, %v739, 0.0
    %741 = vadd.xlane.f32.xlu0 %v740
    %v742 = vpop.xlane.xlu0 %741
    %v743 = vrcp.pop %v742
    %v744 = vmul.f32 %v739, %v743
    %v745 = vpack.c.bf16 %v744, %v744
    %746 = vrot.lane.b32.xlu0 %v475, 40
    %v747 = vpop.permute.xlu0 %746
    %v749 = vsel %vm159, %v745, 0
    %v752 = vsel %vm197, %v747, 0
    %754 = vmatpush.bf16.msra.mxu0 0
    %755 = vmatpush.bf16.msra.mxu0 0
    %756 = vmatpush.bf16.msra.mxu0 0
    %757 = vmatpush.bf16.msra.mxu0 0
    %758 = vmatpush.bf16.msra.mxu0 0
    %759 = vmatpush.bf16.msra.mxu0 0
    %760 = vmatpush.bf16.msra.mxu0 0
    %761 = vmatpush.bf16.msra.mxu0 %v752
    %762 = vmatmul.bf16.gmra.mxu0 %v749
    %v763 = vpop.f32.mrf.mxu0
    %v764 = vadd.f32 0.0, %v763
    %v765 = vpop.f32.mrf.mxu0
    %766 = vdwg.mxu0
    %v767 = vpack.c.bf16 %v764, %v764
    %v768 = vld [vmem:[%s452] sm:$0xf]
    %v770 = vsel %vm159, %v767, 0
    %v773 = vsel %vm197, %v768, 0
    %775 = vmatpush.bf16.msra.mxu0 0
    %776 = vmatpush.bf16.msra.mxu0 0
    %777 = vmatpush.bf16.msra.mxu0 0
    %778 = vmatpush.bf16.msra.mxu0 0
    %779 = vmatpush.bf16.msra.mxu0 0
    %780 = vmatpush.bf16.msra.mxu0 0
    %781 = vmatpush.bf16.msra.mxu0 0
    %782 = vmatpush.bf16.msra.mxu0 %v773
    %783 = vmatmul.bf16.gmra.mxu0 %v770
    %v784 = vpop.f32.mrf.mxu0
    %v785 = vadd.f32 0.0, %v784
    %v786 = vpop.f32.mrf.mxu0
    %787 = vdwg.mxu0
    %v788 = vadd.f32 %v709, %v785
    %789 = vst.msk [vmem:[#allocation2 + $0x8] sm:$0xff] %vm50, %v788
    %v790 = vld [vmem:[#allocation2] sm:$0xff]
    %v791 = vld [vmem:[#allocation2 + $0x8] sm:$0xff]
    %v792 = vadd.f32 %v46, %v790
    %v793 = vadd.f32 %v47, %v791
    %v794 = vld [vmem:[%s6] sm:$0x1]
    %v796 = vperm.slane %v794, 0
    %v798 = vadd.f32 %v792, %v796
    %v799 = vadd.f32 %v793, %v796
    %v800 = vld [vmem:[%s7] sm:$0x1]
    %v801 = vld [vmem:[%s8] sm:$0x1]
    %v802 = vsel %vm50, %v798, 0.0
    %803 = vadd.xlane.f32.xlu0 %v802
    %v804 = vpop.xlane.xlu0 %803
    %v805 = vsel %vm50, %v799, 0.0
    %806 = vadd.xlane.f32.xlu0 %v805
    %v807 = vpop.xlane.xlu0 %806
    %v808 = vmul.f32 %v804, %v63
    %v809 = vmul.f32 %v807, %v63
    %v810 = vsub.f32 %v798, %v808
    %v811 = vsub.f32 %v799, %v809
    %v812 = vmul.f32 %v810, %v810
    %v813 = vmul.f32 %v811, %v811
    %v814 = vsel %vm50, %v812, 0.0
    %815 = vadd.xlane.f32.xlu0 %v814
    %v816 = vpop.xlane.xlu0 %815
    %v817 = vsel %vm50, %v813, 0.0
    %818 = vadd.xlane.f32.xlu0 %v817
    %v819 = vpop.xlane.xlu0 %818
    %v820 = vmul.f32 %v816, %v63
    %v821 = vmul.f32 %v819, %v63
    %v822 = vadd.f32 %v820, 1e-05
    %v823 = vadd.f32 %v821, 1e-05
    %v824 = vrsqrt.pop %v822
    %v825 = vmul.f32 %v824, %v822
    %v826 = vmul.f32 %v825, %v824
    %v827 = vmul.f32 0.5, %v826
    %v828 = vsub.f32 1.5, %v827
    %v829 = vmul.f32 %v824, %v828
    %vm830 = vweird.f32 %v822
    %vm831 = vweird.f32 %v824
    %vm832 = vmor %vm830, %vm831
    %v833 = vsel %vm832, %v824, %v829
    %v834 = vrsqrt.pop %v823
    %v835 = vmul.f32 %v834, %v823
    %v836 = vmul.f32 %v835, %v834
    %v837 = vmul.f32 0.5, %v836
    %v838 = vsub.f32 1.5, %v837
    %v839 = vmul.f32 %v834, %v838
    %vm840 = vweird.f32 %v823
    %vm841 = vweird.f32 %v834
    %vm842 = vmor %vm840, %vm841
    %v843 = vsel %vm842, %v834, %v839
    %v844 = vmul.f32 %v810, %v833
    %v845 = vmul.f32 %v811, %v843
    %v847 = vperm.slane %v800, 0
    %v849 = vmul.f32 %v844, %v847
    %v850 = vmul.f32 %v845, %v847
    %v852 = vperm.slane %v801, 0
    %v854 = vadd.f32 %v849, %v852
    %v855 = vadd.f32 %v850, %v852
    %v856 = vpack.c.bf16 %v855, %v854
    %v857 = vld [vmem:[%s9] sm:$0xf]
    %v858 = vld [vmem:[%s9 + $0x4] sm:$0xf]
    %v859 = vld [vmem:[%s9 + $0x8] sm:$0xf]
    %v860 = vld [vmem:[%s9 + $0xc] sm:$0xf]
    %v861 = vld [vmem:[%s10] sm:$0x1]
    %v863 = vperm.slane %v861, 0
    %v869 = vunpack.c.l.b16 %v857
    %v870 = vunpack.c.l.b16 %v858
    %v871 = vunpack.c.l.b16 %v859
    %v872 = vunpack.c.l.b16 %v860
    %v873 = vpack.c.b16 %v870, %v869
    %v874 = vpack.c.b16 %v872, %v871
    %v878 = vsel %vm50, %v856, 0
    %880 = vmatpush.bf16.msra.mxu0 0
    %881 = vmatpush.bf16.msra.mxu0 0
    %882 = vmatpush.bf16.msra.mxu0 0
    %883 = vmatpush.bf16.msra.mxu0 0
    %884 = vmatpush.bf16.msra.mxu0 0
    %885 = vmatpush.bf16.msra.mxu0 0
    %886 = vmatpush.bf16.msra.mxu0 %v874
    %887 = vmatpush.bf16.msra.mxu0 %v873
    %888 = vmatmul.bf16.gmra.mxu0 %v878
    %v889 = vpop.f32.mrf.mxu0
    %v890 = vadd.f32 %v863, %v889
    %v891 = vpop.f32.mrf.mxu0
    %v892 = vadd.f32 %v863, %v891
    %893 = vdwg.mxu0
    %v894 = vmul.f32 %v890, 0.5
    %v895 = vmul.f32 %v892, 0.5
    %v896 = vmul.f32 %v890, 0.044715
    %v897 = vmul.f32 %v892, 0.044715
    %v898 = vmul.f32 %v896, %v890
    %v899 = vmul.f32 %v897, %v892
    %v900 = vmul.f32 %v898, %v890
    %v901 = vmul.f32 %v899, %v892
    %v902 = vadd.f32 %v890, %v900
    %v903 = vadd.f32 %v892, %v901
    %v904 = vmul.f32 %v902, 0.7978846
    %v905 = vmul.f32 %v903, 0.7978846
    %v906 = vtanh.pop %v904
    %v907 = vtanh.pop %v905
    %v908 = vadd.f32 %v906, 1.0
    %v909 = vadd.f32 %v907, 1.0
    %v910 = vmul.f32 %v894, %v908
    %v911 = vmul.f32 %v895, %v909
    %v912 = vpack.c.bf16 %v911, %v910
    %v913 = vld [vmem:[%s11] sm:$0xf]
    %v914 = vld [vmem:[%s11 + $0x4] sm:$0xf]
    %v915 = vld [vmem:[%s11 + $0x8] sm:$0xf]
    %v916 = vld [vmem:[%s11 + $0xc] sm:$0xf]
    %v917 = vld [vmem:[%s11 + $0x10] sm:$0xf]
    %v918 = vld [vmem:[%s11 + $0x14] sm:$0xf]
    %v919 = vld [vmem:[%s11 + $0x18] sm:$0xf]
    %v920 = vld [vmem:[%s11 + $0x1c] sm:$0xf]
    %v921 = vld [vmem:[%s11 + $0x20] sm:$0xf]
    %v922 = vld [vmem:[%s11 + $0x24] sm:$0xf]
    %v923 = vld [vmem:[%s11 + $0x28] sm:$0xf]
    %v924 = vld [vmem:[%s11 + $0x2c] sm:$0xf]
    %v925 = vld [vmem:[%s11 + $0x30] sm:$0xf]
    %v926 = vld [vmem:[%s11 + $0x34] sm:$0xf]
    %v927 = vld [vmem:[%s11 + $0x38] sm:$0xf]
    %v928 = vld [vmem:[%s11 + $0x3c] sm:$0xf]
    %v929 = vld [vmem:[%s12] sm:$0x1]
    %v931 = vperm.slane %v929, 0
    %v949 = vunpack.c.l.b16 %v913
    %v950 = vunpack.c.l.b16 %v914
    %v951 = vunpack.c.l.b16 %v915
    %v952 = vunpack.c.l.b16 %v916
    %v953 = vunpack.c.l.b16 %v917
    %v954 = vunpack.c.l.b16 %v918
    %v955 = vunpack.c.l.b16 %v919
    %v956 = vunpack.c.l.b16 %v920
    %v957 = vunpack.c.l.b16 %v921
    %v958 = vunpack.c.l.b16 %v922
    %v959 = vunpack.c.l.b16 %v923
    %v960 = vunpack.c.l.b16 %v924
    %v961 = vunpack.c.l.b16 %v925
    %v962 = vunpack.c.l.b16 %v926
    %v963 = vunpack.c.l.b16 %v927
    %v964 = vunpack.c.l.b16 %v928
    %v965 = vpack.c.b16 %v950, %v949
    %v966 = vpack.c.b16 %v952, %v951
    %v967 = vpack.c.b16 %v954, %v953
    %v968 = vpack.c.b16 %v956, %v955
    %v969 = vpack.c.b16 %v958, %v957
    %v970 = vpack.c.b16 %v960, %v959
    %v971 = vpack.c.b16 %v962, %v961
    %v972 = vpack.c.b16 %v964, %v963
    %981 = vmatpush.bf16.msra.mxu0 %v972
    %982 = vmatpush.bf16.msra.mxu0 %v971
    %983 = vmatpush.bf16.msra.mxu0 %v970
    %984 = vmatpush.bf16.msra.mxu0 %v969
    %985 = vmatpush.bf16.msra.mxu0 %v968
    %986 = vmatpush.bf16.msra.mxu0 %v967
    %987 = vmatpush.bf16.msra.mxu0 %v966
    %988 = vmatpush.bf16.msra.mxu0 %v965
    %989 = vmatmul.bf16.gmra.mxu0 %v912
    %v990 = vpop.f32.mrf.mxu0
    %v991 = vadd.f32 %v931, %v990
    %v992 = vpop.f32.mrf.mxu0
    %v993 = vadd.f32 %v931, %v992
    %994 = vdwg.mxu0
    %v995 = vadd.f32 %v798, %v991
    %v996 = vadd.f32 %v799, %v993
    %997 = vst.msk [vmem:[#allocation3] sm:$0xff] %vm50, %v995
    %998 = vst.msk [vmem:[#allocation3 + $0x8] sm:$0xff] %vm50, %v996
    // Predicated region
    $region54: #{tpu_custom_call.1} parent=1 // pred_check
      _
    $region55: #{tpu_custom_call.1} parent=1 // pred_check_branch
      %1000 = sbr.rel (0) target = $region57
    $region56: #{tpu_custom_call.1} parent=1 // pred_region
      %1002 = vsyncadd [#allocation4], 0
      %s1003 = sshll.u32 [#allocation3], 4
      %s1004 = int_to_ptr.vmem [resolvable:$true] %s1003
      %s1005 = sshll.u32 %s13, 4
      %s1006 = int_to_ptr.hbm [resolvable:$true] %s1005
      %1011 = dma.vmem_to_hbm [thread:$0]  %s1004, 256, %s1006, [#allocation4], 128, 128, 8
    $region57: #{tpu_custom_call.1} parent=1 // pred_fallthru
      _
    // Predicated region
    $region58: #{tpu_custom_call.1} parent=1 // pred_check
      _
    $region59: #{tpu_custom_call.1} parent=1 // pred_check_branch
      %1013 = sbr.rel (0) target = $region61
    $region60: #{tpu_custom_call.1} parent=1 // pred_region
      %1015 = dma.done [#allocation4], 256
    $region61: #{tpu_custom_call.1} parent=1 // pred_fallthru
      _
    %1016 = vsyncpa [#allocation4], 1

</llo_original>
